<compile_context>
chip_gen: v5e
topology: v5e:2x2
jax: 0.10.0
libtpu: 0.0.40
codegen_flags: <defaults>
</compile_context>

<pallas_src>
import functools

import jax
import jax.numpy as jnp
from jax.experimental import pallas as pl
from jax.experimental.pallas import tpu as pltpu


def _two_mlp_head_kernel(x_ref, w6_ref, b6_ref, w7_ref, b7_ref, o_ref, acc_ref):
    """Grid = (row_tiles, k_tiles). K (fc6 reduction) is the last, 'arbitrary' axis."""
    k = pl.program_id(1)

    @pl.when(k == 0)
    def _init():
        acc_ref[...] = jnp.zeros_like(acc_ref)

    # Partial fc6: accumulate this K-slab into the f32 VMEM accumulator.
    acc_ref[...] += jnp.dot(x_ref[...], w6_ref[...],
                            preferred_element_type=jnp.float32)

    @pl.when(k == pl.num_programs(1) - 1)
    def _finalize():
        # bias + ReLU in f32, then fc7 (operands possibly bf16, f32 accum).
        h = jnp.maximum(acc_ref[...] + b6_ref[...], 0.0)
        y = jnp.dot(h.astype(w7_ref.dtype), w7_ref[...],
                    preferred_element_type=jnp.float32)
        y = jnp.maximum(y + b7_ref[...], 0.0)
        o_ref[...] = y.astype(o_ref.dtype)


def _pick_tile_m(n):
    # >=256 rows: fill the 256-row MXU on v6e/v7x; otherwise 128 (full fill on
    # v5e's 128-wide MXU, still fine on newer chips).
    return 256 if n >= 256 else 128


def _pick_tile_k(in_ch, cap=2048):
    # Largest multiple of 128 that divides in_ch exactly (no K padding needed),
    # capped so the streamed W6 K-slab stays a few MiB.
    if in_ch % 128 != 0:
        return in_ch  # full-K single step (block dim == full array dim is legal)
    best = 128
    t = 128
    while t <= min(cap, in_ch):
        if in_ch % t == 0:
            best = t
        t += 128
    return best


@functools.partial(jax.jit, static_argnames=("tile_m", "tile_k", "use_bf16"))
def two_mlp_head(x, w6, b6, w7, b7, *, tile_m=None, tile_k=None, use_bf16=True):
    """x: (N, C, H, W). w6: (C*H*W, rep). w7: (rep, rep). Returns (N, rep) f32."""
    n = x.shape[0]
    x_flat = x.reshape(n, -1)          # same as torch flatten(start_dim=1); layout-free
    in_ch = x_flat.shape[1]
    rep = w6.shape[1]
    assert w6.shape[0] == in_ch and w7.shape == (rep, rep)

    if tile_m is None:
        tile_m = _pick_tile_m(n)
    if tile_k is None:
        tile_k = _pick_tile_k(in_ch)
    assert in_ch % tile_k == 0, "tile_k must divide in_features exactly"

    grid_m = pl.cdiv(n, tile_m)        # masked edge tile; no jnp.pad copy of x
    grid_k = in_ch // tile_k

    cdtype = jnp.bfloat16 if use_bf16 else x.dtype
    x_c = x_flat.astype(cdtype)
    w6_c = w6.astype(cdtype)
    w7_c = w7.astype(cdtype)
    b6_2d = b6.reshape(1, rep).astype(jnp.float32)
    b7_2d = b7.reshape(1, rep).astype(jnp.float32)

    isz = jnp.dtype(cdtype).itemsize

    # Resident VMEM footprint (double-buffered inputs/outputs + accumulator),
    # used to set an explicit scoped-VMEM budget. Capped at 48 MiB: safe on
    # v7x's 64 MiB physical VMEM and far above the default 16/32 MiB limits.
    footprint = 2 * (tile_m * tile_k * isz      # x K-slab
                     + tile_k * rep * isz       # W6 K-slab
                     + rep * rep * isz          # W7 (constant block)
                     + 2 * rep * 4              # biases
                     + tile_m * rep * 4)        # output tile (f32)
    footprint += tile_m * rep * 4               # accumulator scratch
    vmem_limit = int(min(max(footprint + (4 << 20), 16 << 20), 48 << 20))

    flops = 2 * n * in_ch * rep + 2 * n * rep * rep
    bytes_accessed = (n * in_ch * isz                 # activations read once
                      + grid_m * in_ch * rep * isz    # W6 streamed per row tile
                      + rep * rep * isz + 2 * rep * 4
                      + n * rep * 4)                  # output
    cost = pl.CostEstimate(flops=flops, transcendentals=0,
                           bytes_accessed=int(bytes_accessed))

    out = pl.pallas_call(
        _two_mlp_head_kernel,
        out_shape=jax.ShapeDtypeStruct((n, rep), jnp.float32),
        grid_spec=pltpu.PrefetchScalarGridSpec(
            num_scalar_prefetch=0,
            grid=(grid_m, grid_k),
            in_specs=[
                pl.BlockSpec((tile_m, tile_k), lambda i, k: (i, k)),  # x slab
                pl.BlockSpec((tile_k, rep), lambda i, k: (k, 0)),     # W6 K-slab
                pl.BlockSpec((1, rep), lambda i, k: (0, 0)),          # b6 (const)
                pl.BlockSpec((rep, rep), lambda i, k: (0, 0)),        # W7 (const)
                pl.BlockSpec((1, rep), lambda i, k: (0, 0)),          # b7 (const)
            ],
            out_specs=pl.BlockSpec((tile_m, rep), lambda i, k: (i, 0)),
            scratch_shapes=[pltpu.VMEM((tile_m, rep), jnp.float32)],
        ),
        compiler_params=pltpu.CompilerParams(
            dimension_semantics=("parallel", "arbitrary"),
            vmem_limit_bytes=vmem_limit,
        ),
        cost_estimate=cost,
    )(x_c, w6_c, b6_2d, w7_c, b7_2d)

    return out


def _reference(x, w6, b6, w7, b7, *, cast_bf16=False):
    xf = x.reshape(x.shape[0], -1)
    if cast_bf16:
        xf = xf.astype(jnp.bfloat16)
        w6 = w6.astype(jnp.bfloat16)
        w7 = w7.astype(jnp.bfloat16)
    h = jnp.maximum(jnp.dot(xf, w6, preferred_element_type=jnp.float32) + b6, 0.0)
    h = h.astype(w7.dtype)
    y = jnp.maximum(jnp.dot(h, w7, preferred_element_type=jnp.float32) + b7, 0.0)
    return y.astype(jnp.float32)


if __name__ == "__main__":
    key = jax.random.PRNGKey(0)
    k_x, k_w6, k_b6, k_w7, k_b7, k_x2, k_w6b = jax.random.split(key, 7)

    # Small shapes consistent with roi-pooled features feeding the 2-layer FC head.
    N, C, H, W = 2, 4, 16, 16
    in_channels = C * H * W            # 1024
    representation_size = 128

    x = jax.random.normal(k_x, (N, C, H, W), dtype=jnp.float32)
    w6 = jax.random.normal(k_w6, (in_channels, representation_size),
                           dtype=jnp.float32) * 0.02
    b6 = jax.random.normal(k_b6, (representation_size,), dtype=jnp.float32) * 0.02
    w7 = jax.random.normal(k_w7, (representation_size, representation_size),
                           dtype=jnp.float32) * 0.02
    b7 = jax.random.normal(k_b7, (representation_size,), dtype=jnp.float32) * 0.02

    # f32-operand path: tight check against the f32 reference.
    out_f32 = jax.block_until_ready(two_mlp_head(x, w6, b6, w7, b7, use_bf16=False))
    ref_f32 = _reference(x, w6, b6, w7, b7, cast_bf16=False)
    assert out_f32.shape == (N, representation_size)
    assert jnp.allclose(out_f32, ref_f32, atol=1e-3, rtol=1e-3)

    # Default bf16-operand path: compare against an identically-quantized reference.
    out_bf16 = jax.block_until_ready(two_mlp_head(x, w6, b6, w7, b7))
    ref_bf16 = _reference(x, w6, b6, w7, b7, cast_bf16=True)
    assert jnp.allclose(out_bf16, ref_bf16, atol=5e-3, rtol=5e-3)

    # Second case exercising the K-reduction grid axis (grid_k = 2) and a
    # masked (non-divisible) row tile, still at small scale.
    N2, C2, H2, W2 = 10, 16, 16, 16    # in_ch2 = 4096 -> tile_k = 2048, 2 K steps
    in_ch2 = C2 * H2 * W2
    x2 = jax.random.normal(k_x2, (N2, C2, H2, W2), dtype=jnp.float32)
    w6b = jax.random.normal(k_w6b, (in_ch2, representation_size),
                            dtype=jnp.float32) * 0.02
    out2 = jax.block_until_ready(two_mlp_head(x2, w6b, b6, w7, b7))
    ref2 = _reference(x2, w6b, b6, w7, b7, cast_bf16=True)
    assert out2.shape == (N2, representation_size)
    assert jnp.allclose(out2, ref2, atol=5e-3, rtol=5e-3)

    print("KERNEL_OK")
</pallas_src>

<mosaic_0001>
module attributes {stable_mosaic.version = 11 : i64} {
  func.func @_two_mlp_head_kernel(%arg0: i32, %arg1: i32, %arg2: memref<128x1024xf32, #tpu.memory_space<vmem>>, %arg3: memref<1024x128xf32, #tpu.memory_space<vmem>>, %arg4: memref<1x128xf32, #tpu.memory_space<vmem>>, %arg5: memref<128x128xf32, #tpu.memory_space<vmem>>, %arg6: memref<1x128xf32, #tpu.memory_space<vmem>>, %arg7: memref<128x128xf32, #tpu.memory_space<vmem>>, %arg8: memref<128x128xf32, #tpu.memory_space<vmem>>) attributes {dimension_semantics = [#tpu.dimension_semantics<parallel>, #tpu.dimension_semantics<arbitrary>], iteration_bounds = array<i64: 1, 1>, scalar_prefetch = 0 : i64, scratch_operands = 1 : i64, tpu.core_type = #tpu.core_type<tc>, window_params = [{transform_indices = @transform_0, window_bounds = array<i64: 128, 1024>}, {transform_indices = @transform_1, window_bounds = array<i64: 1024, 128>}, {pipeline_mode = #tpu.pipeline_mode<synchronous>, transform_indices = @transform_2, window_bounds = array<i64: 1, 128>}, {pipeline_mode = #tpu.pipeline_mode<synchronous>, transform_indices = @transform_3, window_bounds = array<i64: 128, 128>}, {pipeline_mode = #tpu.pipeline_mode<synchronous>, transform_indices = @transform_4, window_bounds = array<i64: 1, 128>}, {transform_indices = @transform_5, window_bounds = array<i64: 128, 128>}]} {
    %c0_i32 = arith.constant 0 : i32
    %0 = arith.cmpi eq, %arg1, %c0_i32 : i32
    %1 = arith.extui %0 : i1 to i32
    %c0_i32_0 = arith.constant 0 : i32
    %2 = arith.cmpi ne, %1, %c0_i32_0 : i32
    scf.if %2 {
      %cst_10 = arith.constant 0.000000e+00 : f32
      %12 = vector.broadcast %cst_10 : f32 to vector<128x128xf32>
      %c0_11 = arith.constant 0 : index
      %c0_12 = arith.constant 0 : index
      %13 = vector.load %arg8[%c0_11, %c0_12] : memref<128x128xf32, #tpu.memory_space<vmem>>, vector<128x128xf32>
      tpu.vector_store %arg8[%c0_11, %c0_12], %12 {strides = array<i32>} : memref<128x128xf32, #tpu.memory_space<vmem>>, vector<128x128xf32>,
    } else {
    }
    %c0 = arith.constant 0 : index
    %c0_1 = arith.constant 0 : index
    %3 = vector.load %arg8[%c0, %c0_1] : memref<128x128xf32, #tpu.memory_space<vmem>>, vector<128x128xf32>
    %c0_2 = arith.constant 0 : index
    %c0_3 = arith.constant 0 : index
    %4 = vector.load %arg2[%c0_2, %c0_3] : memref<128x1024xf32, #tpu.memory_space<vmem>>, vector<128x1024xf32>
    %c0_4 = arith.constant 0 : index
    %c0_5 = arith.constant 0 : index
    %5 = vector.load %arg3[%c0_4, %c0_5] : memref<1024x128xf32, #tpu.memory_space<vmem>>, vector<1024x128xf32>
    %cst = arith.constant dense<0.000000e+00> : vector<128x128xf32>
    %6 = tpu.matmul %4, %5, %cst {dimension_numbers = #tpu.dot_dimension_numbers<[1], [0], [0], [1], [0, 0, 1, 1], [], []>} : vector<128x1024xf32>, vector<1024x128xf32>, vector<128x128xf32> -> vector<128x128xf32>
    %7 = arith.addf %3, %6 : vector<128x128xf32>
    %c0_6 = arith.constant 0 : index
    %c0_7 = arith.constant 0 : index
    %8 = vector.load %arg8[%c0_6, %c0_7] : memref<128x128xf32, #tpu.memory_space<vmem>>, vector<128x128xf32>
    tpu.vector_store %arg8[%c0_6, %c0_7], %7 {strides = array<i32>} : memref<128x128xf32, #tpu.memory_space<vmem>>, vector<128x128xf32>,
    %c0_i32_8 = arith.constant 0 : i32
    %9 = arith.cmpi eq, %arg1, %c0_i32_8 : i32
    %10 = arith.extui %9 : i1 to i32
    %c0_i32_9 = arith.constant 0 : i32
    %11 = arith.cmpi ne, %10, %c0_i32_9 : i32
    scf.if %11 {
      %c0_10 = arith.constant 0 : index
      %c0_11 = arith.constant 0 : index
      %12 = vector.load %arg8[%c0_10, %c0_11] : memref<128x128xf32, #tpu.memory_space<vmem>>, vector<128x128xf32>
      %c0_12 = arith.constant 0 : index
      %c0_13 = arith.constant 0 : index
      %13 = vector.load %arg4[%c0_12, %c0_13] : memref<1x128xf32, #tpu.memory_space<vmem>>, vector<1x128xf32>
      %14 = vector.broadcast %13 : vector<1x128xf32> to vector<128x128xf32>
      %15 = arith.addf %12, %14 : vector<128x128xf32>
      %cst_14 = arith.constant 0.000000e+00 : f32
      %16 = vector.broadcast %cst_14 : f32 to vector<128x128xf32>
      %17 = arith.maximumf %15, %16 : vector<128x128xf32>
      %c0_15 = arith.constant 0 : index
      %c0_16 = arith.constant 0 : index
      %18 = vector.load %arg5[%c0_15, %c0_16] : memref<128x128xf32, #tpu.memory_space<vmem>>, vector<128x128xf32>
      %cst_17 = arith.constant dense<0.000000e+00> : vector<128x128xf32>
      %19 = tpu.matmul %17, %18, %cst_17 {dimension_numbers = #tpu.dot_dimension_numbers<[1], [0], [0], [1], [0, 0, 1, 1], [], []>} : vector<128x128xf32>, vector<128x128xf32>, vector<128x128xf32> -> vector<128x128xf32>
      %c0_18 = arith.constant 0 : index
      %c0_19 = arith.constant 0 : index
      %20 = vector.load %arg6[%c0_18, %c0_19] : memref<1x128xf32, #tpu.memory_space<vmem>>, vector<1x128xf32>
      %21 = vector.broadcast %20 : vector<1x128xf32> to vector<128x128xf32>
      %22 = arith.addf %19, %21 : vector<128x128xf32>
      %cst_20 = arith.constant 0.000000e+00 : f32
      %23 = vector.broadcast %cst_20 : f32 to vector<128x128xf32>
      %24 = arith.maximumf %22, %23 : vector<128x128xf32>
      %c0_21 = arith.constant 0 : index
      %c0_22 = arith.constant 0 : index
      %25 = vector.load %arg7[%c0_21, %c0_22] : memref<128x128xf32, #tpu.memory_space<vmem>>, vector<128x128xf32>
      tpu.vector_store %arg7[%c0_21, %c0_22], %24 {strides = array<i32>} : memref<128x128xf32, #tpu.memory_space<vmem>>, vector<128x128xf32>,
    } else {
    }
    return
  }
  func.func @transform_0(%arg0: i32, %arg1: i32) -> (i32, i32) {
    %c0_i32 = arith.constant 0 : i32
    return %arg0, %arg1 : i32, i32
  }
  func.func @transform_1(%arg0: i32, %arg1: i32) -> (i32, i32) {
    %c0_i32 = arith.constant 0 : i32
    %c0_i32_0 = arith.constant 0 : i32
    return %arg1, %c0_i32 : i32, i32
  }
  func.func @transform_2(%arg0: i32, %arg1: i32) -> (i32, i32) {
    %c0_i32 = arith.constant 0 : i32
    %c0_i32_0 = arith.constant 0 : i32
    %c0_i32_1 = arith.constant 0 : i32
    return %c0_i32, %c0_i32_0 : i32, i32
  }
  func.func @transform_3(%arg0: i32, %arg1: i32) -> (i32, i32) {
    %c0_i32 = arith.constant 0 : i32
    %c0_i32_0 = arith.constant 0 : i32
    %c0_i32_1 = arith.constant 0 : i32
    return %c0_i32, %c0_i32_0 : i32, i32
  }
  func.func @transform_4(%arg0: i32, %arg1: i32) -> (i32, i32) {
    %c0_i32 = arith.constant 0 : i32
    %c0_i32_0 = arith.constant 0 : i32
    %c0_i32_1 = arith.constant 0 : i32
    return %c0_i32, %c0_i32_0 : i32, i32
  }
  func.func @transform_5(%arg0: i32, %arg1: i32) -> (i32, i32) {
    %c0_i32 = arith.constant 0 : i32
    %c0_i32_0 = arith.constant 0 : i32
    return %arg0, %c0_i32 : i32, i32
  }
}

</mosaic_0001>

<llo_original>
// kernel: two_mlp_head.1
$region0: #{two_mlp_head.1}
  #allocation0 [shape = 'u32[]', space=smem, size = 0x4, offset = 0x4, fixed_abs, tag = 'smem constant byte address 0x4 - core index']
  #allocation1 [shape = 'u32[72,128]{1,0:T(1,128)}', space=vmem, size = 0x9000, scoped, tag = 'internal scratch']
  #allocation2 [shape = 'f32[128,128]{1,0:T(8,128)}', space=vmem, size = 0x10000, scoped, tag = 'scratch operand']
  %s0 = inlined_call_operand.vmem [shape: f32[2,1024], index: 0, kind: input, shape index: {}]
  %s1 = inlined_call_operand.hbm [shape: f32[1024,128], index: 1, kind: input, shape index: {}]
  %s2 = inlined_call_operand.vmem [shape: f32[1,128], index: 2, kind: input, shape index: {}]
  %s3 = inlined_call_operand.vmem [shape: f32[128,128], index: 3, kind: input, shape index: {}]
  %s4 = inlined_call_operand.vmem [shape: f32[1,128], index: 4, kind: input, shape index: {}]
  %s5 = inlined_call_operand.hbm [shape: f32[2,128], index: 5, kind: output, shape index: {}]
  %s6 = sld [smem:[#allocation0]]
  $region42: #{two_mlp_head.1} parent=0
    _
  %s8 = ssub.s32 1, %s6
  %s9 = scalar_select 0, %s8, %s6
  $region1: #{two_mlp_head.1} parent=0
    #allocation3 [shape = 'u8[524288]{0}', space=vmem, size = 0x80000, scoped, tag = 'input window, operand 1, single buffered']
    #allocation4 [shape = 's32[1]{0}', space=sflag, size = 0x4, scoped, tag = 'scoped memory for two_mlp_head.1']
    #allocation5 [shape = 's32[1]{0}', space=sflag, size = 0x4, scoped, tag = 'scoped memory for two_mlp_head.1']
    #allocation6 [shape = 'u8[65536]{0}', space=vmem, size = 0x10000, scoped, tag = 'output window, operand 0, single buffered']
    %10 = vsyncpa [#allocation4], 0
    %11 = vsyncpa [#allocation5], 0
    // Predicated region
    $region2: #{two_mlp_head.1} parent=1 // pred_check
      _
    $region3: #{two_mlp_head.1} parent=1 // pred_check_branch
      %13 = sbr.rel (0) target = $region5
    $region4: #{two_mlp_head.1} parent=1 // pred_region
      _
    $region5: #{two_mlp_head.1} parent=1 // pred_fallthru
      _
    // Predicated region
    $region6: #{two_mlp_head.1} parent=1 // pred_check
      _
    $region7: #{two_mlp_head.1} parent=1 // pred_check_branch
      %15 = sbr.rel (0) target = $region9
    $region8: #{two_mlp_head.1} parent=1 // pred_region
      %17 = vsyncadd [#allocation4], 0
      %s18 = sshll.u32 %s1, 4
      %s19 = int_to_ptr.hbm [resolvable:$true] %s18
      %s20 = sshll.u32 [#allocation3], 4
      %s21 = int_to_ptr.vmem [resolvable:$true] %s20
      %26 = dma.hbm_to_vmem [thread:$0]  %s19, 16384, %s21, [#allocation4], 128, 128, 8
    $region9: #{two_mlp_head.1} parent=1 // pred_fallthru
      _
    // Predicated region
    $region10: #{two_mlp_head.1} parent=1 // pred_check
      _
    $region11: #{two_mlp_head.1} parent=1 // pred_check_branch
      %28 = sbr.rel (0) target = $region13
    $region12: #{two_mlp_head.1} parent=1 // pred_region
      _
    $region13: #{two_mlp_head.1} parent=1 // pred_fallthru
      _
    // Predicated region
    $region14: #{two_mlp_head.1} parent=1 // pred_check
      _
    $region15: #{two_mlp_head.1} parent=1 // pred_check_branch
      %30 = sbr.rel (0) target = $region17
    $region16: #{two_mlp_head.1} parent=1 // pred_region
      _
    $region17: #{two_mlp_head.1} parent=1 // pred_fallthru
      _
    // Predicated region
    $region18: #{two_mlp_head.1} parent=1 // pred_check
      _
    $region19: #{two_mlp_head.1} parent=1 // pred_check_branch
      %32 = sbr.rel (0) target = $region21
    $region20: #{two_mlp_head.1} parent=1 // pred_region
      _
    $region21: #{two_mlp_head.1} parent=1 // pred_fallthru
      _
    // Predicated region
    $region22: #{two_mlp_head.1} parent=1 // pred_check
      _
    $region23: #{two_mlp_head.1} parent=1 // pred_check_branch
      %34 = sbr.rel (0) target = $region25
    $region24: #{two_mlp_head.1} parent=1 // pred_region
      %36 = dma.done [#allocation4], 16384
    $region25: #{two_mlp_head.1} parent=1 // pred_fallthru
      _
    %p37 = scmp.eq.s32.totalorder 0, 0
    // Predicated region
    $region26: #{two_mlp_head.1} parent=1 // pred_check
      %p38 = pneg %p37
    $region27: #{two_mlp_head.1} parent=1 // pred_check_branch
      %40 = sbr.rel (%p38) target = $region29
    $region28: #{two_mlp_head.1} parent=1 // pred_region
      %41 = vst [vmem:[#allocation2] sm:$0xff] 0.0
      %42 = vst [vmem:[#allocation2 + $0x8] sm:$0xff] 0.0
      %43 = vst [vmem:[#allocation2 + $0x10] sm:$0xff] 0.0
      %44 = vst [vmem:[#allocation2 + $0x18] sm:$0xff] 0.0
      %45 = vst [vmem:[#allocation2 + $0x20] sm:$0xff] 0.0
      %46 = vst [vmem:[#allocation2 + $0x28] sm:$0xff] 0.0
      %47 = vst [vmem:[#allocation2 + $0x30] sm:$0xff] 0.0
      %48 = vst [vmem:[#allocation2 + $0x38] sm:$0xff] 0.0
      %49 = vst [vmem:[#allocation2 + $0x40] sm:$0xff] 0.0
      %50 = vst [vmem:[#allocation2 + $0x48] sm:$0xff] 0.0
      %51 = vst [vmem:[#allocation2 + $0x50] sm:$0xff] 0.0
      %52 = vst [vmem:[#allocation2 + $0x58] sm:$0xff] 0.0
      %53 = vst [vmem:[#allocation2 + $0x60] sm:$0xff] 0.0
      %54 = vst [vmem:[#allocation2 + $0x68] sm:$0xff] 0.0
      %55 = vst [vmem:[#allocation2 + $0x70] sm:$0xff] 0.0
      %56 = vst [vmem:[#allocation2 + $0x78] sm:$0xff] 0.0
    $region29: #{two_mlp_head.1} parent=1 // pred_fallthru
      _
    %v57 = vld [vmem:[#allocation2] sm:$0xff]
    %v58 = vld [vmem:[#allocation2 + $0x8] sm:$0xff]
    %v59 = vld [vmem:[#allocation2 + $0x10] sm:$0xff]
    %v60 = vld [vmem:[#allocation2 + $0x18] sm:$0xff]
    %v61 = vld [vmem:[#allocation2 + $0x20] sm:$0xff]
    %v62 = vld [vmem:[#allocation2 + $0x28] sm:$0xff]
    %v63 = vld [vmem:[#allocation2 + $0x30] sm:$0xff]
    %v64 = vld [vmem:[#allocation2 + $0x38] sm:$0xff]
    %v65 = vld [vmem:[#allocation2 + $0x40] sm:$0xff]
    %v66 = vld [vmem:[#allocation2 + $0x48] sm:$0xff]
    %v67 = vld [vmem:[#allocation2 + $0x50] sm:$0xff]
    %v68 = vld [vmem:[#allocation2 + $0x58] sm:$0xff]
    %v69 = vld [vmem:[#allocation2 + $0x60] sm:$0xff]
    %v70 = vld [vmem:[#allocation2 + $0x68] sm:$0xff]
    %v71 = vld [vmem:[#allocation2 + $0x70] sm:$0xff]
    %v72 = vld [vmem:[#allocation2 + $0x78] sm:$0xff]
    %v73 = vld [vmem:[%s0] sm:$0xff]
    %v74 = vld [vmem:[%s0 + $0x8] sm:$0xff]
    %v75 = vld [vmem:[%s0 + $0x10] sm:$0xff]
    %v76 = vld [vmem:[%s0 + $0x18] sm:$0xff]
    %v77 = vld [vmem:[%s0 + $0x20] sm:$0xff]
    %v78 = vld [vmem:[%s0 + $0x28] sm:$0xff]
    %v79 = vld [vmem:[%s0 + $0x30] sm:$0xff]
    %v80 = vld [vmem:[%s0 + $0x38] sm:$0xff]
    %v81 = vld [vmem:[%s0 + $0x40] sm:$0xff]
    %v82 = vld [vmem:[%s0 + $0x48] sm:$0xff]
    %v83 = vld [vmem:[%s0 + $0x50] sm:$0xff]
    %v84 = vld [vmem:[%s0 + $0x58] sm:$0xff]
    %v85 = vld [vmem:[%s0 + $0x60] sm:$0xff]
    %v86 = vld [vmem:[%s0 + $0x68] sm:$0xff]
    %v87 = vld [vmem:[%s0 + $0x70] sm:$0xff]
    %v88 = vld [vmem:[%s0 + $0x78] sm:$0xff]
    %v89 = vld [vmem:[%s0 + $0x80] sm:$0xff]
    %v90 = vld [vmem:[%s0 + $0x88] sm:$0xff]
    %v91 = vld [vmem:[%s0 + $0x90] sm:$0xff]
    %v92 = vld [vmem:[%s0 + $0x98] sm:$0xff]
    %v93 = vld [vmem:[%s0 + $0xa0] sm:$0xff]
    %v94 = vld [vmem:[%s0 + $0xa8] sm:$0xff]
    %v95 = vld [vmem:[%s0 + $0xb0] sm:$0xff]
    %v96 = vld [vmem:[%s0 + $0xb8] sm:$0xff]
    %v97 = vld [vmem:[%s0 + $0xc0] sm:$0xff]
    %v98 = vld [vmem:[%s0 + $0xc8] sm:$0xff]
    %v99 = vld [vmem:[%s0 + $0xd0] sm:$0xff]
    %v100 = vld [vmem:[%s0 + $0xd8] sm:$0xff]
    %v101 = vld [vmem:[%s0 + $0xe0] sm:$0xff]
    %v102 = vld [vmem:[%s0 + $0xe8] sm:$0xff]
    %v103 = vld [vmem:[%s0 + $0xf0] sm:$0xff]
    %v104 = vld [vmem:[%s0 + $0xf8] sm:$0xff]
    %v105 = vld [vmem:[%s0 + $0x100] sm:$0xff]
    %v106 = vld [vmem:[%s0 + $0x108] sm:$0xff]
    %v107 = vld [vmem:[%s0 + $0x110] sm:$0xff]
    %v108 = vld [vmem:[%s0 + $0x118] sm:$0xff]
    %v109 = vld [vmem:[%s0 + $0x120] sm:$0xff]
    %v110 = vld [vmem:[%s0 + $0x128] sm:$0xff]
    %v111 = vld [vmem:[%s0 + $0x130] sm:$0xff]
    %v112 = vld [vmem:[%s0 + $0x138] sm:$0xff]
    %v113 = vld [vmem:[%s0 + $0x140] sm:$0xff]
    %v114 = vld [vmem:[%s0 + $0x148] sm:$0xff]
    %v115 = vld [vmem:[%s0 + $0x150] sm:$0xff]
    %v116 = vld [vmem:[%s0 + $0x158] sm:$0xff]
    %v117 = vld [vmem:[%s0 + $0x160] sm:$0xff]
    %v118 = vld [vmem:[%s0 + $0x168] sm:$0xff]
    %v119 = vld [vmem:[%s0 + $0x170] sm:$0xff]
    %v120 = vld [vmem:[%s0 + $0x178] sm:$0xff]
    %v121 = vld [vmem:[%s0 + $0x180] sm:$0xff]
    %v122 = vld [vmem:[%s0 + $0x188] sm:$0xff]
    %v123 = vld [vmem:[%s0 + $0x190] sm:$0xff]
    %v124 = vld [vmem:[%s0 + $0x198] sm:$0xff]
    %v125 = vld [vmem:[%s0 + $0x1a0] sm:$0xff]
    %v126 = vld [vmem:[%s0 + $0x1a8] sm:$0xff]
    %v127 = vld [vmem:[%s0 + $0x1b0] sm:$0xff]
    %v128 = vld [vmem:[%s0 + $0x1b8] sm:$0xff]
    %v129 = vld [vmem:[%s0 + $0x1c0] sm:$0xff]
    %v130 = vld [vmem:[%s0 + $0x1c8] sm:$0xff]
    %v131 = vld [vmem:[%s0 + $0x1d0] sm:$0xff]
    %v132 = vld [vmem:[%s0 + $0x1d8] sm:$0xff]
    %v133 = vld [vmem:[%s0 + $0x1e0] sm:$0xff]
    %v134 = vld [vmem:[%s0 + $0x1e8] sm:$0xff]
    %v135 = vld [vmem:[%s0 + $0x1f0] sm:$0xff]
    %v136 = vld [vmem:[%s0 + $0x1f8] sm:$0xff]
    %v137 = vld [vmem:[%s0 + $0x200] sm:$0xff]
    %v138 = vld [vmem:[%s0 + $0x208] sm:$0xff]
    %v139 = vld [vmem:[%s0 + $0x210] sm:$0xff]
    %v140 = vld [vmem:[%s0 + $0x218] sm:$0xff]
    %v141 = vld [vmem:[%s0 + $0x220] sm:$0xff]
    %v142 = vld [vmem:[%s0 + $0x228] sm:$0xff]
    %v143 = vld [vmem:[%s0 + $0x230] sm:$0xff]
    %v144 = vld [vmem:[%s0 + $0x238] sm:$0xff]
    %v145 = vld [vmem:[%s0 + $0x240] sm:$0xff]
    %v146 = vld [vmem:[%s0 + $0x248] sm:$0xff]
    %v147 = vld [vmem:[%s0 + $0x250] sm:$0xff]
    %v148 = vld [vmem:[%s0 + $0x258] sm:$0xff]
    %v149 = vld [vmem:[%s0 + $0x260] sm:$0xff]
    %v150 = vld [vmem:[%s0 + $0x268] sm:$0xff]
    %v151 = vld [vmem:[%s0 + $0x270] sm:$0xff]
    %v152 = vld [vmem:[%s0 + $0x278] sm:$0xff]
    %v153 = vld [vmem:[%s0 + $0x280] sm:$0xff]
    %v154 = vld [vmem:[%s0 + $0x288] sm:$0xff]
    %v155 = vld [vmem:[%s0 + $0x290] sm:$0xff]
    %v156 = vld [vmem:[%s0 + $0x298] sm:$0xff]
    %v157 = vld [vmem:[%s0 + $0x2a0] sm:$0xff]
    %v158 = vld [vmem:[%s0 + $0x2a8] sm:$0xff]
    %v159 = vld [vmem:[%s0 + $0x2b0] sm:$0xff]
    %v160 = vld [vmem:[%s0 + $0x2b8] sm:$0xff]
    %v161 = vld [vmem:[%s0 + $0x2c0] sm:$0xff]
    %v162 = vld [vmem:[%s0 + $0x2c8] sm:$0xff]
    %v163 = vld [vmem:[%s0 + $0x2d0] sm:$0xff]
    %v164 = vld [vmem:[%s0 + $0x2d8] sm:$0xff]
    %v165 = vld [vmem:[%s0 + $0x2e0] sm:$0xff]
    %v166 = vld [vmem:[%s0 + $0x2e8] sm:$0xff]
    %v167 = vld [vmem:[%s0 + $0x2f0] sm:$0xff]
    %v168 = vld [vmem:[%s0 + $0x2f8] sm:$0xff]
    %v169 = vld [vmem:[%s0 + $0x300] sm:$0xff]
    %v170 = vld [vmem:[%s0 + $0x308] sm:$0xff]
    %v171 = vld [vmem:[%s0 + $0x310] sm:$0xff]
    %v172 = vld [vmem:[%s0 + $0x318] sm:$0xff]
    %v173 = vld [vmem:[%s0 + $0x320] sm:$0xff]
    %v174 = vld [vmem:[%s0 + $0x328] sm:$0xff]
    %v175 = vld [vmem:[%s0 + $0x330] sm:$0xff]
    %v176 = vld [vmem:[%s0 + $0x338] sm:$0xff]
    %v177 = vld [vmem:[%s0 + $0x340] sm:$0xff]
    %v178 = vld [vmem:[%s0 + $0x348] sm:$0xff]
    %v179 = vld [vmem:[%s0 + $0x350] sm:$0xff]
    %v180 = vld [vmem:[%s0 + $0x358] sm:$0xff]
    %v181 = vld [vmem:[%s0 + $0x360] sm:$0xff]
    %v182 = vld [vmem:[%s0 + $0x368] sm:$0xff]
    %v183 = vld [vmem:[%s0 + $0x370] sm:$0xff]
    %v184 = vld [vmem:[%s0 + $0x378] sm:$0xff]
    %v185 = vld [vmem:[%s0 + $0x380] sm:$0xff]
    %v186 = vld [vmem:[%s0 + $0x388] sm:$0xff]
    %v187 = vld [vmem:[%s0 + $0x390] sm:$0xff]
    %v188 = vld [vmem:[%s0 + $0x398] sm:$0xff]
    %v189 = vld [vmem:[%s0 + $0x3a0] sm:$0xff]
    %v190 = vld [vmem:[%s0 + $0x3a8] sm:$0xff]
    %v191 = vld [vmem:[%s0 + $0x3b0] sm:$0xff]
    %v192 = vld [vmem:[%s0 + $0x3b8] sm:$0xff]
    %v193 = vld [vmem:[%s0 + $0x3c0] sm:$0xff]
    %v194 = vld [vmem:[%s0 + $0x3c8] sm:$0xff]
    %v195 = vld [vmem:[%s0 + $0x3d0] sm:$0xff]
    %v196 = vld [vmem:[%s0 + $0x3d8] sm:$0xff]
    %v197 = vld [vmem:[%s0 + $0x3e0] sm:$0xff]
    %v198 = vld [vmem:[%s0 + $0x3e8] sm:$0xff]
    %v199 = vld [vmem:[%s0 + $0x3f0] sm:$0xff]
    %v200 = vld [vmem:[%s0 + $0x3f8] sm:$0xff]
    %v201 = vld [vmem:[#allocation3] sm:$0xff]
    %v202 = vld [vmem:[#allocation3 + $0x8] sm:$0xff]
    %v203 = vld [vmem:[#allocation3 + $0x10] sm:$0xff]
    %v204 = vld [vmem:[#allocation3 + $0x18] sm:$0xff]
    %v205 = vld [vmem:[#allocation3 + $0x20] sm:$0xff]
    %v206 = vld [vmem:[#allocation3 + $0x28] sm:$0xff]
    %v207 = vld [vmem:[#allocation3 + $0x30] sm:$0xff]
    %v208 = vld [vmem:[#allocation3 + $0x38] sm:$0xff]
    %v209 = vld [vmem:[#allocation3 + $0x40] sm:$0xff]
    %v210 = vld [vmem:[#allocation3 + $0x48] sm:$0xff]
    %v211 = vld [vmem:[#allocation3 + $0x50] sm:$0xff]
    %v212 = vld [vmem:[#allocation3 + $0x58] sm:$0xff]
    %v213 = vld [vmem:[#allocation3 + $0x60] sm:$0xff]
    %v214 = vld [vmem:[#allocation3 + $0x68] sm:$0xff]
    %v215 = vld [vmem:[#allocation3 + $0x70] sm:$0xff]
    %v216 = vld [vmem:[#allocation3 + $0x78] sm:$0xff]
    %v217 = vld [vmem:[#allocation3 + $0x80] sm:$0xff]
    %v218 = vld [vmem:[#allocation3 + $0x88] sm:$0xff]
    %v219 = vld [vmem:[#allocation3 + $0x90] sm:$0xff]
    %v220 = vld [vmem:[#allocation3 + $0x98] sm:$0xff]
    %v221 = vld [vmem:[#allocation3 + $0xa0] sm:$0xff]
    %v222 = vld [vmem:[#allocation3 + $0xa8] sm:$0xff]
    %v223 = vld [vmem:[#allocation3 + $0xb0] sm:$0xff]
    %v224 = vld [vmem:[#allocation3 + $0xb8] sm:$0xff]
    %v225 = vld [vmem:[#allocation3 + $0xc0] sm:$0xff]
    %v226 = vld [vmem:[#allocation3 + $0xc8] sm:$0xff]
    %v227 = vld [vmem:[#allocation3 + $0xd0] sm:$0xff]
    %v228 = vld [vmem:[#allocation3 + $0xd8] sm:$0xff]
    %v229 = vld [vmem:[#allocation3 + $0xe0] sm:$0xff]
    %v230 = vld [vmem:[#allocation3 + $0xe8] sm:$0xff]
    %v231 = vld [vmem:[#allocation3 + $0xf0] sm:$0xff]
    %v232 = vld [vmem:[#allocation3 + $0xf8] sm:$0xff]
    %v233 = vld [vmem:[#allocation3 + $0x100] sm:$0xff]
    %v234 = vld [vmem:[#allocation3 + $0x108] sm:$0xff]
    %v235 = vld [vmem:[#allocation3 + $0x110] sm:$0xff]
    %v236 = vld [vmem:[#allocation3 + $0x118] sm:$0xff]
    %v237 = vld [vmem:[#allocation3 + $0x120] sm:$0xff]
    %v238 = vld [vmem:[#allocation3 + $0x128] sm:$0xff]
    %v239 = vld [vmem:[#allocation3 + $0x130] sm:$0xff]
    %v240 = vld [vmem:[#allocation3 + $0x138] sm:$0xff]
    %v241 = vld [vmem:[#allocation3 + $0x140] sm:$0xff]
    %v242 = vld [vmem:[#allocation3 + $0x148] sm:$0xff]
    %v243 = vld [vmem:[#allocation3 + $0x150] sm:$0xff]
    %v244 = vld [vmem:[#allocation3 + $0x158] sm:$0xff]
    %v245 = vld [vmem:[#allocation3 + $0x160] sm:$0xff]
    %v246 = vld [vmem:[#allocation3 + $0x168] sm:$0xff]
    %v247 = vld [vmem:[#allocation3 + $0x170] sm:$0xff]
    %v248 = vld [vmem:[#allocation3 + $0x178] sm:$0xff]
    %v249 = vld [vmem:[#allocation3 + $0x180] sm:$0xff]
    %v250 = vld [vmem:[#allocation3 + $0x188] sm:$0xff]
    %v251 = vld [vmem:[#allocation3 + $0x190] sm:$0xff]
    %v252 = vld [vmem:[#allocation3 + $0x198] sm:$0xff]
    %v253 = vld [vmem:[#allocation3 + $0x1a0] sm:$0xff]
    %v254 = vld [vmem:[#allocation3 + $0x1a8] sm:$0xff]
    %v255 = vld [vmem:[#allocation3 + $0x1b0] sm:$0xff]
    %v256 = vld [vmem:[#allocation3 + $0x1b8] sm:$0xff]
    %v257 = vld [vmem:[#allocation3 + $0x1c0] sm:$0xff]
    %v258 = vld [vmem:[#allocation3 + $0x1c8] sm:$0xff]
    %v259 = vld [vmem:[#allocation3 + $0x1d0] sm:$0xff]
    %v260 = vld [vmem:[#allocation3 + $0x1d8] sm:$0xff]
    %v261 = vld [vmem:[#allocation3 + $0x1e0] sm:$0xff]
    %v262 = vld [vmem:[#allocation3 + $0x1e8] sm:$0xff]
    %v263 = vld [vmem:[#allocation3 + $0x1f0] sm:$0xff]
    %v264 = vld [vmem:[#allocation3 + $0x1f8] sm:$0xff]
    %v265 = vld [vmem:[#allocation3 + $0x200] sm:$0xff]
    %v266 = vld [vmem:[#allocation3 + $0x208] sm:$0xff]
    %v267 = vld [vmem:[#allocation3 + $0x210] sm:$0xff]
    %v268 = vld [vmem:[#allocation3 + $0x218] sm:$0xff]
    %v269 = vld [vmem:[#allocation3 + $0x220] sm:$0xff]
    %v270 = vld [vmem:[#allocation3 + $0x228] sm:$0xff]
    %v271 = vld [vmem:[#allocation3 + $0x230] sm:$0xff]
    %v272 = vld [vmem:[#allocation3 + $0x238] sm:$0xff]
    %v273 = vld [vmem:[#allocation3 + $0x240] sm:$0xff]
    %v274 = vld [vmem:[#allocation3 + $0x248] sm:$0xff]
    %v275 = vld [vmem:[#allocation3 + $0x250] sm:$0xff]
    %v276 = vld [vmem:[#allocation3 + $0x258] sm:$0xff]
    %v277 = vld [vmem:[#allocation3 + $0x260] sm:$0xff]
    %v278 = vld [vmem:[#allocation3 + $0x268] sm:$0xff]
    %v279 = vld [vmem:[#allocation3 + $0x270] sm:$0xff]
    %v280 = vld [vmem:[#allocation3 + $0x278] sm:$0xff]
    %v281 = vld [vmem:[#allocation3 + $0x280] sm:$0xff]
    %v282 = vld [vmem:[#allocation3 + $0x288] sm:$0xff]
    %v283 = vld [vmem:[#allocation3 + $0x290] sm:$0xff]
    %v284 = vld [vmem:[#allocation3 + $0x298] sm:$0xff]
    %v285 = vld [vmem:[#allocation3 + $0x2a0] sm:$0xff]
    %v286 = vld [vmem:[#allocation3 + $0x2a8] sm:$0xff]
    %v287 = vld [vmem:[#allocation3 + $0x2b0] sm:$0xff]
    %v288 = vld [vmem:[#allocation3 + $0x2b8] sm:$0xff]
    %v289 = vld [vmem:[#allocation3 + $0x2c0] sm:$0xff]
    %v290 = vld [vmem:[#allocation3 + $0x2c8] sm:$0xff]
    %v291 = vld [vmem:[#allocation3 + $0x2d0] sm:$0xff]
    %v292 = vld [vmem:[#allocation3 + $0x2d8] sm:$0xff]
    %v293 = vld [vmem:[#allocation3 + $0x2e0] sm:$0xff]
    %v294 = vld [vmem:[#allocation3 + $0x2e8] sm:$0xff]
    %v295 = vld [vmem:[#allocation3 + $0x2f0] sm:$0xff]
    %v296 = vld [vmem:[#allocation3 + $0x2f8] sm:$0xff]
    %v297 = vld [vmem:[#allocation3 + $0x300] sm:$0xff]
    %v298 = vld [vmem:[#allocation3 + $0x308] sm:$0xff]
    %v299 = vld [vmem:[#allocation3 + $0x310] sm:$0xff]
    %v300 = vld [vmem:[#allocation3 + $0x318] sm:$0xff]
    %v301 = vld [vmem:[#allocation3 + $0x320] sm:$0xff]
    %v302 = vld [vmem:[#allocation3 + $0x328] sm:$0xff]
    %v303 = vld [vmem:[#allocation3 + $0x330] sm:$0xff]
    %v304 = vld [vmem:[#allocation3 + $0x338] sm:$0xff]
    %v305 = vld [vmem:[#allocation3 + $0x340] sm:$0xff]
    %v306 = vld [vmem:[#allocation3 + $0x348] sm:$0xff]
    %v307 = vld [vmem:[#allocation3 + $0x350] sm:$0xff]
    %v308 = vld [vmem:[#allocation3 + $0x358] sm:$0xff]
    %v309 = vld [vmem:[#allocation3 + $0x360] sm:$0xff]
    %v310 = vld [vmem:[#allocation3 + $0x368] sm:$0xff]
    %v311 = vld [vmem:[#allocation3 + $0x370] sm:$0xff]
    %v312 = vld [vmem:[#allocation3 + $0x378] sm:$0xff]
    %v313 = vld [vmem:[#allocation3 + $0x380] sm:$0xff]
    %v314 = vld [vmem:[#allocation3 + $0x388] sm:$0xff]
    %v315 = vld [vmem:[#allocation3 + $0x390] sm:$0xff]
    %v316 = vld [vmem:[#allocation3 + $0x398] sm:$0xff]
    %v317 = vld [vmem:[#allocation3 + $0x3a0] sm:$0xff]
    %v318 = vld [vmem:[#allocation3 + $0x3a8] sm:$0xff]
    %v319 = vld [vmem:[#allocation3 + $0x3b0] sm:$0xff]
    %v320 = vld [vmem:[#allocation3 + $0x3b8] sm:$0xff]
    %v321 = vld [vmem:[#allocation3 + $0x3c0] sm:$0xff]
    %v322 = vld [vmem:[#allocation3 + $0x3c8] sm:$0xff]
    %v323 = vld [vmem:[#allocation3 + $0x3d0] sm:$0xff]
    %v324 = vld [vmem:[#allocation3 + $0x3d8] sm:$0xff]
    %v325 = vld [vmem:[#allocation3 + $0x3e0] sm:$0xff]
    %v326 = vld [vmem:[#allocation3 + $0x3e8] sm:$0xff]
    %v327 = vld [vmem:[#allocation3 + $0x3f0] sm:$0xff]
    %v328 = vld [vmem:[#allocation3 + $0x3f8] sm:$0xff]
    %457 = vst [vmem:[#allocation1] ss:$4 sm:$0xff] %v73
    %s458 = scalar_lea.vmem [#allocation1], 1
    %459 = vst [vmem:[%s458] ss:$4 sm:$0xff] %v75
    %s460 = scalar_lea.vmem [#allocation1], 2
    %461 = vst [vmem:[%s460] ss:$4 sm:$0xff] %v77
    %s462 = scalar_lea.vmem [#allocation1], 3
    %463 = vst [vmem:[%s462] ss:$4 sm:$0xff] %v79
    %s464 = scalar_lea.vmem [#allocation1], 32
    %465 = vst [vmem:[%s464] ss:$4 sm:$0xff] %v74
    %s466 = scalar_lea.vmem [#allocation1], 33
    %467 = vst [vmem:[%s466] ss:$4 sm:$0xff] %v76
    %s468 = scalar_lea.vmem [#allocation1], 34
    %469 = vst [vmem:[%s468] ss:$4 sm:$0xff] %v78
    %s470 = scalar_lea.vmem [#allocation1], 35
    %471 = vst [vmem:[%s470] ss:$4 sm:$0xff] %v80
    %v472 = vld.sshfl [vmem:[#allocation1] sm:$0xff pattern:$0x73625140]
    %v473 = vld.sshfl [vmem:[#allocation1 + $0x8] sm:$0xff pattern:$0x73625140]
    %v474 = vld.sshfl [vmem:[#allocation1 + $0x10] sm:$0xff pattern:$0x73625140]
    %v475 = vld.sshfl [vmem:[#allocation1 + $0x18] sm:$0xff pattern:$0x73625140]
    %v476 = vld.sshfl [vmem:[#allocation1 + $0x20] sm:$0xff pattern:$0x73625140]
    %v477 = vld.sshfl [vmem:[#allocation1 + $0x28] sm:$0xff pattern:$0x73625140]
    %v478 = vld.sshfl [vmem:[#allocation1 + $0x30] sm:$0xff pattern:$0x73625140]
    %v479 = vld.sshfl [vmem:[#allocation1 + $0x38] sm:$0xff pattern:$0x73625140]
    %480 = vst [vmem:[#allocation1] ss:$4 sm:$0xff] %v81
    %481 = vst [vmem:[%s458] ss:$4 sm:$0xff] %v83
    %482 = vst [vmem:[%s460] ss:$4 sm:$0xff] %v85
    %483 = vst [vmem:[%s462] ss:$4 sm:$0xff] %v87
    %484 = vst [vmem:[%s464] ss:$4 sm:$0xff] %v82
    %485 = vst [vmem:[%s466] ss:$4 sm:$0xff] %v84
    %486 = vst [vmem:[%s468] ss:$4 sm:$0xff] %v86
    %487 = vst [vmem:[%s470] ss:$4 sm:$0xff] %v88
    %v488 = vld.sshfl [vmem:[#allocation1] sm:$0xff pattern:$0x73625140]
    %v489 = vld.sshfl [vmem:[#allocation1 + $0x8] sm:$0xff pattern:$0x73625140]
    %v490 = vld.sshfl [vmem:[#allocation1 + $0x10] sm:$0xff pattern:$0x73625140]
    %v491 = vld.sshfl [vmem:[#allocation1 + $0x18] sm:$0xff pattern:$0x73625140]
    %v492 = vld.sshfl [vmem:[#allocation1 + $0x20] sm:$0xff pattern:$0x73625140]
    %v493 = vld.sshfl [vmem:[#allocation1 + $0x28] sm:$0xff pattern:$0x73625140]
    %v494 = vld.sshfl [vmem:[#allocation1 + $0x30] sm:$0xff pattern:$0x73625140]
    %v495 = vld.sshfl [vmem:[#allocation1 + $0x38] sm:$0xff pattern:$0x73625140]
    %496 = vst [vmem:[#allocation1] ss:$4 sm:$0xff] %v89
    %497 = vst [vmem:[%s458] ss:$4 sm:$0xff] %v91
    %498 = vst [vmem:[%s460] ss:$4 sm:$0xff] %v93
    %499 = vst [vmem:[%s462] ss:$4 sm:$0xff] %v95
    %500 = vst [vmem:[%s464] ss:$4 sm:$0xff] %v90
    %501 = vst [vmem:[%s466] ss:$4 sm:$0xff] %v92
    %502 = vst [vmem:[%s468] ss:$4 sm:$0xff] %v94
    %503 = vst [vmem:[%s470] ss:$4 sm:$0xff] %v96
    %v504 = vld.sshfl [vmem:[#allocation1] sm:$0xff pattern:$0x73625140]
    %v505 = vld.sshfl [vmem:[#allocation1 + $0x8] sm:$0xff pattern:$0x73625140]
    %v506 = vld.sshfl [vmem:[#allocation1 + $0x10] sm:$0xff pattern:$0x73625140]
    %v507 = vld.sshfl [vmem:[#allocation1 + $0x18] sm:$0xff pattern:$0x73625140]
    %v508 = vld.sshfl [vmem:[#allocation1 + $0x20] sm:$0xff pattern:$0x73625140]
    %v509 = vld.sshfl [vmem:[#allocation1 + $0x28] sm:$0xff pattern:$0x73625140]
    %v510 = vld.sshfl [vmem:[#allocation1 + $0x30] sm:$0xff pattern:$0x73625140]
    %v511 = vld.sshfl [vmem:[#allocation1 + $0x38] sm:$0xff pattern:$0x73625140]
    %512 = vst [vmem:[#allocation1] ss:$4 sm:$0xff] %v97
    %513 = vst [vmem:[%s458] ss:$4 sm:$0xff] %v99
    %514 = vst [vmem:[%s460] ss:$4 sm:$0xff] %v101
    %515 = vst [vmem:[%s462] ss:$4 sm:$0xff] %v103
    %516 = vst [vmem:[%s464] ss:$4 sm:$0xff] %v98
    %517 = vst [vmem:[%s466] ss:$4 sm:$0xff] %v100
    %518 = vst [vmem:[%s468] ss:$4 sm:$0xff] %v102
    %519 = vst [vmem:[%s470] ss:$4 sm:$0xff] %v104
    %v520 = vld.sshfl [vmem:[#allocation1] sm:$0xff pattern:$0x73625140]
    %v521 = vld.sshfl [vmem:[#allocation1 + $0x8] sm:$0xff pattern:$0x73625140]
    %v522 = vld.sshfl [vmem:[#allocation1 + $0x10] sm:$0xff pattern:$0x73625140]
    %v523 = vld.sshfl [vmem:[#allocation1 + $0x18] sm:$0xff pattern:$0x73625140]
    %v524 = vld.sshfl [vmem:[#allocation1 + $0x20] sm:$0xff pattern:$0x73625140]
    %v525 = vld.sshfl [vmem:[#allocation1 + $0x28] sm:$0xff pattern:$0x73625140]
    %v526 = vld.sshfl [vmem:[#allocation1 + $0x30] sm:$0xff pattern:$0x73625140]
    %v527 = vld.sshfl [vmem:[#allocation1 + $0x38] sm:$0xff pattern:$0x73625140]
    %528 = vst [vmem:[#allocation1] ss:$4 sm:$0xff] %v105
    %529 = vst [vmem:[%s458] ss:$4 sm:$0xff] %v107
    %530 = vst [vmem:[%s460] ss:$4 sm:$0xff] %v109
    %531 = vst [vmem:[%s462] ss:$4 sm:$0xff] %v111
    %532 = vst [vmem:[%s464] ss:$4 sm:$0xff] %v106
    %533 = vst [vmem:[%s466] ss:$4 sm:$0xff] %v108
    %534 = vst [vmem:[%s468] ss:$4 sm:$0xff] %v110
    %535 = vst [vmem:[%s470] ss:$4 sm:$0xff] %v112
    %v536 = vld.sshfl [vmem:[#allocation1] sm:$0xff pattern:$0x73625140]
    %v537 = vld.sshfl [vmem:[#allocation1 + $0x8] sm:$0xff pattern:$0x73625140]
    %v538 = vld.sshfl [vmem:[#allocation1 + $0x10] sm:$0xff pattern:$0x73625140]
    %v539 = vld.sshfl [vmem:[#allocation1 + $0x18] sm:$0xff pattern:$0x73625140]
    %v540 = vld.sshfl [vmem:[#allocation1 + $0x20] sm:$0xff pattern:$0x73625140]
    %v541 = vld.sshfl [vmem:[#allocation1 + $0x28] sm:$0xff pattern:$0x73625140]
    %v542 = vld.sshfl [vmem:[#allocation1 + $0x30] sm:$0xff pattern:$0x73625140]
    %v543 = vld.sshfl [vmem:[#allocation1 + $0x38] sm:$0xff pattern:$0x73625140]
    %544 = vst [vmem:[#allocation1] ss:$4 sm:$0xff] %v113
    %545 = vst [vmem:[%s458] ss:$4 sm:$0xff] %v115
    %546 = vst [vmem:[%s460] ss:$4 sm:$0xff] %v117
    %547 = vst [vmem:[%s462] ss:$4 sm:$0xff] %v119
    %548 = vst [vmem:[%s464] ss:$4 sm:$0xff] %v114
    %549 = vst [vmem:[%s466] ss:$4 sm:$0xff] %v116
    %550 = vst [vmem:[%s468] ss:$4 sm:$0xff] %v118
    %551 = vst [vmem:[%s470] ss:$4 sm:$0xff] %v120
    %v552 = vld.sshfl [vmem:[#allocation1] sm:$0xff pattern:$0x73625140]
    %v553 = vld.sshfl [vmem:[#allocation1 + $0x8] sm:$0xff pattern:$0x73625140]
    %v554 = vld.sshfl [vmem:[#allocation1 + $0x10] sm:$0xff pattern:$0x73625140]
    %v555 = vld.sshfl [vmem:[#allocation1 + $0x18] sm:$0xff pattern:$0x73625140]
    %v556 = vld.sshfl [vmem:[#allocation1 + $0x20] sm:$0xff pattern:$0x73625140]
    %v557 = vld.sshfl [vmem:[#allocation1 + $0x28] sm:$0xff pattern:$0x73625140]
    %v558 = vld.sshfl [vmem:[#allocation1 + $0x30] sm:$0xff pattern:$0x73625140]
    %v559 = vld.sshfl [vmem:[#allocation1 + $0x38] sm:$0xff pattern:$0x73625140]
    %560 = vst [vmem:[#allocation1] ss:$4 sm:$0xff] %v121
    %561 = vst [vmem:[%s458] ss:$4 sm:$0xff] %v123
    %562 = vst [vmem:[%s460] ss:$4 sm:$0xff] %v125
    %563 = vst [vmem:[%s462] ss:$4 sm:$0xff] %v127
    %564 = vst [vmem:[%s464] ss:$4 sm:$0xff] %v122
    %565 = vst [vmem:[%s466] ss:$4 sm:$0xff] %v124
    %566 = vst [vmem:[%s468] ss:$4 sm:$0xff] %v126
    %567 = vst [vmem:[%s470] ss:$4 sm:$0xff] %v128
    %v568 = vld.sshfl [vmem:[#allocation1] sm:$0xff pattern:$0x73625140]
    %v569 = vld.sshfl [vmem:[#allocation1 + $0x8] sm:$0xff pattern:$0x73625140]
    %v570 = vld.sshfl [vmem:[#allocation1 + $0x10] sm:$0xff pattern:$0x73625140]
    %v571 = vld.sshfl [vmem:[#allocation1 + $0x18] sm:$0xff pattern:$0x73625140]
    %v572 = vld.sshfl [vmem:[#allocation1 + $0x20] sm:$0xff pattern:$0x73625140]
    %v573 = vld.sshfl [vmem:[#allocation1 + $0x28] sm:$0xff pattern:$0x73625140]
    %v574 = vld.sshfl [vmem:[#allocation1 + $0x30] sm:$0xff pattern:$0x73625140]
    %v575 = vld.sshfl [vmem:[#allocation1 + $0x38] sm:$0xff pattern:$0x73625140]
    %576 = vst [vmem:[#allocation1] ss:$4 sm:$0xff] %v129
    %577 = vst [vmem:[%s458] ss:$4 sm:$0xff] %v131
    %578 = vst [vmem:[%s460] ss:$4 sm:$0xff] %v133
    %579 = vst [vmem:[%s462] ss:$4 sm:$0xff] %v135
    %580 = vst [vmem:[%s464] ss:$4 sm:$0xff] %v130
    %581 = vst [vmem:[%s466] ss:$4 sm:$0xff] %v132
    %582 = vst [vmem:[%s468] ss:$4 sm:$0xff] %v134
    %583 = vst [vmem:[%s470] ss:$4 sm:$0xff] %v136
    %v584 = vld.sshfl [vmem:[#allocation1] sm:$0xff pattern:$0x73625140]
    %v585 = vld.sshfl [vmem:[#allocation1 + $0x8] sm:$0xff pattern:$0x73625140]
    %v586 = vld.sshfl [vmem:[#allocation1 + $0x10] sm:$0xff pattern:$0x73625140]
    %v587 = vld.sshfl [vmem:[#allocation1 + $0x18] sm:$0xff pattern:$0x73625140]
    %v588 = vld.sshfl [vmem:[#allocation1 + $0x20] sm:$0xff pattern:$0x73625140]
    %v589 = vld.sshfl [vmem:[#allocation1 + $0x28] sm:$0xff pattern:$0x73625140]
    %v590 = vld.sshfl [vmem:[#allocation1 + $0x30] sm:$0xff pattern:$0x73625140]
    %v591 = vld.sshfl [vmem:[#allocation1 + $0x38] sm:$0xff pattern:$0x73625140]
    %592 = vst [vmem:[#allocation1] ss:$4 sm:$0xff] %v137
    %593 = vst [vmem:[%s458] ss:$4 sm:$0xff] %v139
    %594 = vst [vmem:[%s460] ss:$4 sm:$0xff] %v141
    %595 = vst [vmem:[%s462] ss:$4 sm:$0xff] %v143
    %596 = vst [vmem:[%s464] ss:$4 sm:$0xff] %v138
    %597 = vst [vmem:[%s466] ss:$4 sm:$0xff] %v140
    %598 = vst [vmem:[%s468] ss:$4 sm:$0xff] %v142
    %599 = vst [vmem:[%s470] ss:$4 sm:$0xff] %v144
    %v600 = vld.sshfl [vmem:[#allocation1] sm:$0xff pattern:$0x73625140]
    %v601 = vld.sshfl [vmem:[#allocation1 + $0x8] sm:$0xff pattern:$0x73625140]
    %v602 = vld.sshfl [vmem:[#allocation1 + $0x10] sm:$0xff pattern:$0x73625140]
    %v603 = vld.sshfl [vmem:[#allocation1 + $0x18] sm:$0xff pattern:$0x73625140]
    %v604 = vld.sshfl [vmem:[#allocation1 + $0x20] sm:$0xff pattern:$0x73625140]
    %v605 = vld.sshfl [vmem:[#allocation1 + $0x28] sm:$0xff pattern:$0x73625140]
    %v606 = vld.sshfl [vmem:[#allocation1 + $0x30] sm:$0xff pattern:$0x73625140]
    %v607 = vld.sshfl [vmem:[#allocation1 + $0x38] sm:$0xff pattern:$0x73625140]
    %608 = vst [vmem:[#allocation1] ss:$4 sm:$0xff] %v145
    %609 = vst [vmem:[%s458] ss:$4 sm:$0xff] %v147
    %610 = vst [vmem:[%s460] ss:$4 sm:$0xff] %v149
    %611 = vst [vmem:[%s462] ss:$4 sm:$0xff] %v151
    %612 = vst [vmem:[%s464] ss:$4 sm:$0xff] %v146
    %613 = vst [vmem:[%s466] ss:$4 sm:$0xff] %v148
    %614 = vst [vmem:[%s468] ss:$4 sm:$0xff] %v150
    %615 = vst [vmem:[%s470] ss:$4 sm:$0xff] %v152
    %v616 = vld.sshfl [vmem:[#allocation1] sm:$0xff pattern:$0x73625140]
    %v617 = vld.sshfl [vmem:[#allocation1 + $0x8] sm:$0xff pattern:$0x73625140]
    %v618 = vld.sshfl [vmem:[#allocation1 + $0x10] sm:$0xff pattern:$0x73625140]
    %v619 = vld.sshfl [vmem:[#allocation1 + $0x18] sm:$0xff pattern:$0x73625140]
    %v620 = vld.sshfl [vmem:[#allocation1 + $0x20] sm:$0xff pattern:$0x73625140]
    %v621 = vld.sshfl [vmem:[#allocation1 + $0x28] sm:$0xff pattern:$0x73625140]
    %v622 = vld.sshfl [vmem:[#allocation1 + $0x30] sm:$0xff pattern:$0x73625140]
    %v623 = vld.sshfl [vmem:[#allocation1 + $0x38] sm:$0xff pattern:$0x73625140]
    %624 = vst [vmem:[#allocation1] ss:$4 sm:$0xff] %v153
    %625 = vst [vmem:[%s458] ss:$4 sm:$0xff] %v155
    %626 = vst [vmem:[%s460] ss:$4 sm:$0xff] %v157
    %627 = vst [vmem:[%s462] ss:$4 sm:$0xff] %v159
    %628 = vst [vmem:[%s464] ss:$4 sm:$0xff] %v154
    %629 = vst [vmem:[%s466] ss:$4 sm:$0xff] %v156
    %630 = vst [vmem:[%s468] ss:$4 sm:$0xff] %v158
    %631 = vst [vmem:[%s470] ss:$4 sm:$0xff] %v160
    %v632 = vld.sshfl [vmem:[#allocation1] sm:$0xff pattern:$0x73625140]
    %v633 = vld.sshfl [vmem:[#allocation1 + $0x8] sm:$0xff pattern:$0x73625140]
    %v634 = vld.sshfl [vmem:[#allocation1 + $0x10] sm:$0xff pattern:$0x73625140]
    %v635 = vld.sshfl [vmem:[#allocation1 + $0x18] sm:$0xff pattern:$0x73625140]
    %v636 = vld.sshfl [vmem:[#allocation1 + $0x20] sm:$0xff pattern:$0x73625140]
    %v637 = vld.sshfl [vmem:[#allocation1 + $0x28] sm:$0xff pattern:$0x73625140]
    %v638 = vld.sshfl [vmem:[#allocation1 + $0x30] sm:$0xff pattern:$0x73625140]
    %v639 = vld.sshfl [vmem:[#allocation1 + $0x38] sm:$0xff pattern:$0x73625140]
    %640 = vst [vmem:[#allocation1] ss:$4 sm:$0xff] %v161
    %641 = vst [vmem:[%s458] ss:$4 sm:$0xff] %v163
    %642 = vst [vmem:[%s460] ss:$4 sm:$0xff] %v165
    %643 = vst [vmem:[%s462] ss:$4 sm:$0xff] %v167
    %644 = vst [vmem:[%s464] ss:$4 sm:$0xff] %v162
    %645 = vst [vmem:[%s466] ss:$4 sm:$0xff] %v164
    %646 = vst [vmem:[%s468] ss:$4 sm:$0xff] %v166
    %647 = vst [vmem:[%s470] ss:$4 sm:$0xff] %v168
    %v648 = vld.sshfl [vmem:[#allocation1] sm:$0xff pattern:$0x73625140]
    %v649 = vld.sshfl [vmem:[#allocation1 + $0x8] sm:$0xff pattern:$0x73625140]
    %v650 = vld.sshfl [vmem:[#allocation1 + $0x10] sm:$0xff pattern:$0x73625140]
    %v651 = vld.sshfl [vmem:[#allocation1 + $0x18] sm:$0xff pattern:$0x73625140]
    %v652 = vld.sshfl [vmem:[#allocation1 + $0x20] sm:$0xff pattern:$0x73625140]
    %v653 = vld.sshfl [vmem:[#allocation1 + $0x28] sm:$0xff pattern:$0x73625140]
    %v654 = vld.sshfl [vmem:[#allocation1 + $0x30] sm:$0xff pattern:$0x73625140]
    %v655 = vld.sshfl [vmem:[#allocation1 + $0x38] sm:$0xff pattern:$0x73625140]
    %656 = vst [vmem:[#allocation1] ss:$4 sm:$0xff] %v169
    %657 = vst [vmem:[%s458] ss:$4 sm:$0xff] %v171
    %658 = vst [vmem:[%s460] ss:$4 sm:$0xff] %v173
    %659 = vst [vmem:[%s462] ss:$4 sm:$0xff] %v175
    %660 = vst [vmem:[%s464] ss:$4 sm:$0xff] %v170
    %661 = vst [vmem:[%s466] ss:$4 sm:$0xff] %v172
    %662 = vst [vmem:[%s468] ss:$4 sm:$0xff] %v174
    %663 = vst [vmem:[%s470] ss:$4 sm:$0xff] %v176
    %v664 = vld.sshfl [vmem:[#allocation1] sm:$0xff pattern:$0x73625140]
    %v665 = vld.sshfl [vmem:[#allocation1 + $0x8] sm:$0xff pattern:$0x73625140]
    %v666 = vld.sshfl [vmem:[#allocation1 + $0x10] sm:$0xff pattern:$0x73625140]
    %v667 = vld.sshfl [vmem:[#allocation1 + $0x18] sm:$0xff pattern:$0x73625140]
    %v668 = vld.sshfl [vmem:[#allocation1 + $0x20] sm:$0xff pattern:$0x73625140]
    %v669 = vld.sshfl [vmem:[#allocation1 + $0x28] sm:$0xff pattern:$0x73625140]
    %v670 = vld.sshfl [vmem:[#allocation1 + $0x30] sm:$0xff pattern:$0x73625140]
    %v671 = vld.sshfl [vmem:[#allocation1 + $0x38] sm:$0xff pattern:$0x73625140]
    %672 = vst [vmem:[#allocation1] ss:$4 sm:$0xff] %v177
    %673 = vst [vmem:[%s458] ss:$4 sm:$0xff] %v179
    %674 = vst [vmem:[%s460] ss:$4 sm:$0xff] %v181
    %675 = vst [vmem:[%s462] ss:$4 sm:$0xff] %v183
    %676 = vst [vmem:[%s464] ss:$4 sm:$0xff] %v178
    %677 = vst [vmem:[%s466] ss:$4 sm:$0xff] %v180
    %678 = vst [vmem:[%s468] ss:$4 sm:$0xff] %v182
    %679 = vst [vmem:[%s470] ss:$4 sm:$0xff] %v184
    %v680 = vld.sshfl [vmem:[#allocation1] sm:$0xff pattern:$0x73625140]
    %v681 = vld.sshfl [vmem:[#allocation1 + $0x8] sm:$0xff pattern:$0x73625140]
    %v682 = vld.sshfl [vmem:[#allocation1 + $0x10] sm:$0xff pattern:$0x73625140]
    %v683 = vld.sshfl [vmem:[#allocation1 + $0x18] sm:$0xff pattern:$0x73625140]
    %v684 = vld.sshfl [vmem:[#allocation1 + $0x20] sm:$0xff pattern:$0x73625140]
    %v685 = vld.sshfl [vmem:[#allocation1 + $0x28] sm:$0xff pattern:$0x73625140]
    %v686 = vld.sshfl [vmem:[#allocation1 + $0x30] sm:$0xff pattern:$0x73625140]
    %v687 = vld.sshfl [vmem:[#allocation1 + $0x38] sm:$0xff pattern:$0x73625140]
    %688 = vst [vmem:[#allocation1] ss:$4 sm:$0xff] %v185
    %689 = vst [vmem:[%s458] ss:$4 sm:$0xff] %v187
    %690 = vst [vmem:[%s460] ss:$4 sm:$0xff] %v189
    %691 = vst [vmem:[%s462] ss:$4 sm:$0xff] %v191
    %692 = vst [vmem:[%s464] ss:$4 sm:$0xff] %v186
    %693 = vst [vmem:[%s466] ss:$4 sm:$0xff] %v188
    %694 = vst [vmem:[%s468] ss:$4 sm:$0xff] %v190
    %695 = vst [vmem:[%s470] ss:$4 sm:$0xff] %v192
    %v696 = vld.sshfl [vmem:[#allocation1] sm:$0xff pattern:$0x73625140]
    %v697 = vld.sshfl [vmem:[#allocation1 + $0x8] sm:$0xff pattern:$0x73625140]
    %v698 = vld.sshfl [vmem:[#allocation1 + $0x10] sm:$0xff pattern:$0x73625140]
    %v699 = vld.sshfl [vmem:[#allocation1 + $0x18] sm:$0xff pattern:$0x73625140]
    %v700 = vld.sshfl [vmem:[#allocation1 + $0x20] sm:$0xff pattern:$0x73625140]
    %v701 = vld.sshfl [vmem:[#allocation1 + $0x28] sm:$0xff pattern:$0x73625140]
    %v702 = vld.sshfl [vmem:[#allocation1 + $0x30] sm:$0xff pattern:$0x73625140]
    %v703 = vld.sshfl [vmem:[#allocation1 + $0x38] sm:$0xff pattern:$0x73625140]
    %704 = vst [vmem:[#allocation1] ss:$4 sm:$0xff] %v193
    %705 = vst [vmem:[%s458] ss:$4 sm:$0xff] %v195
    %706 = vst [vmem:[%s460] ss:$4 sm:$0xff] %v197
    %707 = vst [vmem:[%s462] ss:$4 sm:$0xff] %v199
    %708 = vst [vmem:[%s464] ss:$4 sm:$0xff] %v194
    %709 = vst [vmem:[%s466] ss:$4 sm:$0xff] %v196
    %710 = vst [vmem:[%s468] ss:$4 sm:$0xff] %v198
    %711 = vst [vmem:[%s470] ss:$4 sm:$0xff] %v200
    %v712 = vld.sshfl [vmem:[#allocation1] sm:$0xff pattern:$0x73625140]
    %v713 = vld.sshfl [vmem:[#allocation1 + $0x8] sm:$0xff pattern:$0x73625140]
    %v714 = vld.sshfl [vmem:[#allocation1 + $0x10] sm:$0xff pattern:$0x73625140]
    %v715 = vld.sshfl [vmem:[#allocation1 + $0x18] sm:$0xff pattern:$0x73625140]
    %v716 = vld.sshfl [vmem:[#allocation1 + $0x20] sm:$0xff pattern:$0x73625140]
    %v717 = vld.sshfl [vmem:[#allocation1 + $0x28] sm:$0xff pattern:$0x73625140]
    %v718 = vld.sshfl [vmem:[#allocation1 + $0x30] sm:$0xff pattern:$0x73625140]
    %v719 = vld.sshfl [vmem:[#allocation1 + $0x38] sm:$0xff pattern:$0x73625140]
    %848 = vmatpush.msra.mxu0 %v216
    %849 = vmatpush.msra.mxu0 %v215
    %850 = vmatpush.msra.mxu0 %v214
    %851 = vmatpush.msra.mxu0 %v213
    %852 = vmatpush.msra.mxu0 %v212
    %853 = vmatpush.msra.mxu0 %v211
    %854 = vmatpush.msra.mxu0 %v210
    %855 = vmatpush.msra.mxu0 %v209
    %856 = vmatpush.msra.mxu0 %v208
    %857 = vmatpush.msra.mxu0 %v207
    %858 = vmatpush.msra.mxu0 %v206
    %859 = vmatpush.msra.mxu0 %v205
    %860 = vmatpush.msra.mxu0 %v204
    %861 = vmatpush.msra.mxu0 %v203
    %862 = vmatpush.msra.mxu0 %v202
    %863 = vmatpush.msra.mxu0 %v201
    %864 = vmatmul.f32.gmra.mxu0 %v472
    %v865 = vpop.f32.mrf.mxu0
    %v866 = vadd.f32 0.0, %v865
    %867 = vmatmul.f32.gmra.mxu0 %v488
    %v868 = vpop.f32.mrf.mxu0
    %v869 = vadd.f32 0.0, %v868
    %870 = vmatmul.f32.gmra.mxu0 %v504
    %v871 = vpop.f32.mrf.mxu0
    %v872 = vadd.f32 0.0, %v871
    %873 = vmatmul.f32.gmra.mxu0 %v520
    %v874 = vpop.f32.mrf.mxu0
    %v875 = vadd.f32 0.0, %v874
    %876 = vmatmul.f32.gmra.mxu0 %v536
    %v877 = vpop.f32.mrf.mxu0
    %v878 = vadd.f32 0.0, %v877
    %879 = vmatmul.f32.gmra.mxu0 %v552
    %v880 = vpop.f32.mrf.mxu0
    %v881 = vadd.f32 0.0, %v880
    %882 = vmatmul.f32.gmra.mxu0 %v568
    %v883 = vpop.f32.mrf.mxu0
    %v884 = vadd.f32 0.0, %v883
    %885 = vmatmul.f32.gmra.mxu0 %v584
    %v886 = vpop.f32.mrf.mxu0
    %v887 = vadd.f32 0.0, %v886
    %888 = vmatmul.f32.gmra.mxu0 %v600
    %v889 = vpop.f32.mrf.mxu0
    %v890 = vadd.f32 0.0, %v889
    %891 = vmatmul.f32.gmra.mxu0 %v616
    %v892 = vpop.f32.mrf.mxu0
    %v893 = vadd.f32 0.0, %v892
    %894 = vmatmul.f32.gmra.mxu0 %v632
    %v895 = vpop.f32.mrf.mxu0
    %v896 = vadd.f32 0.0, %v895
    %897 = vmatmul.f32.gmra.mxu0 %v648
    %v898 = vpop.f32.mrf.mxu0
    %v899 = vadd.f32 0.0, %v898
    %900 = vmatmul.f32.gmra.mxu0 %v664
    %v901 = vpop.f32.mrf.mxu0
    %v902 = vadd.f32 0.0, %v901
    %903 = vmatmul.f32.gmra.mxu0 %v680
    %v904 = vpop.f32.mrf.mxu0
    %v905 = vadd.f32 0.0, %v904
    %906 = vmatmul.f32.gmra.mxu0 %v696
    %v907 = vpop.f32.mrf.mxu0
    %v908 = vadd.f32 0.0, %v907
    %909 = vmatmul.f32.gmra.mxu0 %v712
    %v910 = vpop.f32.mrf.mxu0
    %v911 = vadd.f32 0.0, %v910
    %912 = vdwg.mxu0
    %913 = vmatpush.msra.mxu0 %v232
    %914 = vmatpush.msra.mxu0 %v231
    %915 = vmatpush.msra.mxu0 %v230
    %916 = vmatpush.msra.mxu0 %v229
    %917 = vmatpush.msra.mxu0 %v228
    %918 = vmatpush.msra.mxu0 %v227
    %919 = vmatpush.msra.mxu0 %v226
    %920 = vmatpush.msra.mxu0 %v225
    %921 = vmatpush.msra.mxu0 %v224
    %922 = vmatpush.msra.mxu0 %v223
    %923 = vmatpush.msra.mxu0 %v222
    %924 = vmatpush.msra.mxu0 %v221
    %925 = vmatpush.msra.mxu0 %v220
    %926 = vmatpush.msra.mxu0 %v219
    %927 = vmatpush.msra.mxu0 %v218
    %928 = vmatpush.msra.mxu0 %v217
    %929 = vmatmul.f32.gmra.mxu0 %v473
    %v930 = vpop.f32.mrf.mxu0
    %v931 = vadd.f32 %v866, %v930
    %932 = vmatmul.f32.gmra.mxu0 %v489
    %v933 = vpop.f32.mrf.mxu0
    %v934 = vadd.f32 %v869, %v933
    %935 = vmatmul.f32.gmra.mxu0 %v505
    %v936 = vpop.f32.mrf.mxu0
    %v937 = vadd.f32 %v872, %v936
    %938 = vmatmul.f32.gmra.mxu0 %v521
    %v939 = vpop.f32.mrf.mxu0
    %v940 = vadd.f32 %v875, %v939
    %941 = vmatmul.f32.gmra.mxu0 %v537
    %v942 = vpop.f32.mrf.mxu0
    %v943 = vadd.f32 %v878, %v942
    %944 = vmatmul.f32.gmra.mxu0 %v553
    %v945 = vpop.f32.mrf.mxu0
    %v946 = vadd.f32 %v881, %v945
    %947 = vmatmul.f32.gmra.mxu0 %v569
    %v948 = vpop.f32.mrf.mxu0
    %v949 = vadd.f32 %v884, %v948
    %950 = vmatmul.f32.gmra.mxu0 %v585
    %v951 = vpop.f32.mrf.mxu0
    %v952 = vadd.f32 %v887, %v951
    %953 = vmatmul.f32.gmra.mxu0 %v601
    %v954 = vpop.f32.mrf.mxu0
    %v955 = vadd.f32 %v890, %v954
    %956 = vmatmul.f32.gmra.mxu0 %v617
    %v957 = vpop.f32.mrf.mxu0
    %v958 = vadd.f32 %v893, %v957
    %959 = vmatmul.f32.gmra.mxu0 %v633
    %v960 = vpop.f32.mrf.mxu0
    %v961 = vadd.f32 %v896, %v960
    %962 = vmatmul.f32.gmra.mxu0 %v649
    %v963 = vpop.f32.mrf.mxu0
    %v964 = vadd.f32 %v899, %v963
    %965 = vmatmul.f32.gmra.mxu0 %v665
    %v966 = vpop.f32.mrf.mxu0
    %v967 = vadd.f32 %v902, %v966
    %968 = vmatmul.f32.gmra.mxu0 %v681
    %v969 = vpop.f32.mrf.mxu0
    %v970 = vadd.f32 %v905, %v969
    %971 = vmatmul.f32.gmra.mxu0 %v697
    %v972 = vpop.f32.mrf.mxu0
    %v973 = vadd.f32 %v908, %v972
    %974 = vmatmul.f32.gmra.mxu0 %v713
    %v975 = vpop.f32.mrf.mxu0
    %v976 = vadd.f32 %v911, %v975
    %977 = vdwg.mxu0
    %978 = vmatpush.msra.mxu0 %v248
    %979 = vmatpush.msra.mxu0 %v247
    %980 = vmatpush.msra.mxu0 %v246
    %981 = vmatpush.msra.mxu0 %v245
    %982 = vmatpush.msra.mxu0 %v244
    %983 = vmatpush.msra.mxu0 %v243
    %984 = vmatpush.msra.mxu0 %v242
    %985 = vmatpush.msra.mxu0 %v241
    %986 = vmatpush.msra.mxu0 %v240
    %987 = vmatpush.msra.mxu0 %v239
    %988 = vmatpush.msra.mxu0 %v238
    %989 = vmatpush.msra.mxu0 %v237
    %990 = vmatpush.msra.mxu0 %v236
    %991 = vmatpush.msra.mxu0 %v235
    %992 = vmatpush.msra.mxu0 %v234
    %993 = vmatpush.msra.mxu0 %v233
    %994 = vmatmul.f32.gmra.mxu0 %v474
    %v995 = vpop.f32.mrf.mxu0
    %v996 = vadd.f32 %v931, %v995
    %997 = vmatmul.f32.gmra.mxu0 %v490
    %v998 = vpop.f32.mrf.mxu0
    %v999 = vadd.f32 %v934, %v998
    %1000 = vmatmul.f32.gmra.mxu0 %v506
    %v1001 = vpop.f32.mrf.mxu0
    %v1002 = vadd.f32 %v937, %v1001
    %1003 = vmatmul.f32.gmra.mxu0 %v522
    %v1004 = vpop.f32.mrf.mxu0
    %v1005 = vadd.f32 %v940, %v1004
    %1006 = vmatmul.f32.gmra.mxu0 %v538
    %v1007 = vpop.f32.mrf.mxu0
    %v1008 = vadd.f32 %v943, %v1007
    %1009 = vmatmul.f32.gmra.mxu0 %v554
    %v1010 = vpop.f32.mrf.mxu0
    %v1011 = vadd.f32 %v946, %v1010
    %1012 = vmatmul.f32.gmra.mxu0 %v570
    %v1013 = vpop.f32.mrf.mxu0
    %v1014 = vadd.f32 %v949, %v1013
    %1015 = vmatmul.f32.gmra.mxu0 %v586
    %v1016 = vpop.f32.mrf.mxu0
    %v1017 = vadd.f32 %v952, %v1016
    %1018 = vmatmul.f32.gmra.mxu0 %v602
    %v1019 = vpop.f32.mrf.mxu0
    %v1020 = vadd.f32 %v955, %v1019
    %1021 = vmatmul.f32.gmra.mxu0 %v618
    %v1022 = vpop.f32.mrf.mxu0
    %v1023 = vadd.f32 %v958, %v1022
    %1024 = vmatmul.f32.gmra.mxu0 %v634
    %v1025 = vpop.f32.mrf.mxu0
    %v1026 = vadd.f32 %v961, %v1025
    %1027 = vmatmul.f32.gmra.mxu0 %v650
    %v1028 = vpop.f32.mrf.mxu0
    %v1029 = vadd.f32 %v964, %v1028
    %1030 = vmatmul.f32.gmra.mxu0 %v666
    %v1031 = vpop.f32.mrf.mxu0
    %v1032 = vadd.f32 %v967, %v1031
    %1033 = vmatmul.f32.gmra.mxu0 %v682
    %v1034 = vpop.f32.mrf.mxu0
    %v1035 = vadd.f32 %v970, %v1034
    %1036 = vmatmul.f32.gmra.mxu0 %v698
    %v1037 = vpop.f32.mrf.mxu0
    %v1038 = vadd.f32 %v973, %v1037
    %1039 = vmatmul.f32.gmra.mxu0 %v714
    %v1040 = vpop.f32.mrf.mxu0
    %v1041 = vadd.f32 %v976, %v1040
    %1042 = vdwg.mxu0
    %1043 = vmatpush.msra.mxu0 %v264
    %1044 = vmatpush.msra.mxu0 %v263
    %1045 = vmatpush.msra.mxu0 %v262
    %1046 = vmatpush.msra.mxu0 %v261
    %1047 = vmatpush.msra.mxu0 %v260
    %1048 = vmatpush.msra.mxu0 %v259
    %1049 = vmatpush.msra.mxu0 %v258
    %1050 = vmatpush.msra.mxu0 %v257
    %1051 = vmatpush.msra.mxu0 %v256
    %1052 = vmatpush.msra.mxu0 %v255
    %1053 = vmatpush.msra.mxu0 %v254
    %1054 = vmatpush.msra.mxu0 %v253
    %1055 = vmatpush.msra.mxu0 %v252
    %1056 = vmatpush.msra.mxu0 %v251
    %1057 = vmatpush.msra.mxu0 %v250
    %1058 = vmatpush.msra.mxu0 %v249
    %1059 = vmatmul.f32.gmra.mxu0 %v475
    %v1060 = vpop.f32.mrf.mxu0
    %v1061 = vadd.f32 %v996, %v1060
    %1062 = vmatmul.f32.gmra.mxu0 %v491
    %v1063 = vpop.f32.mrf.mxu0
    %v1064 = vadd.f32 %v999, %v1063
    %1065 = vmatmul.f32.gmra.mxu0 %v507
    %v1066 = vpop.f32.mrf.mxu0
    %v1067 = vadd.f32 %v1002, %v1066
    %1068 = vmatmul.f32.gmra.mxu0 %v523
    %v1069 = vpop.f32.mrf.mxu0
    %v1070 = vadd.f32 %v1005, %v1069
    %1071 = vmatmul.f32.gmra.mxu0 %v539
    %v1072 = vpop.f32.mrf.mxu0
    %v1073 = vadd.f32 %v1008, %v1072
    %1074 = vmatmul.f32.gmra.mxu0 %v555
    %v1075 = vpop.f32.mrf.mxu0
    %v1076 = vadd.f32 %v1011, %v1075
    %1077 = vmatmul.f32.gmra.mxu0 %v571
    %v1078 = vpop.f32.mrf.mxu0
    %v1079 = vadd.f32 %v1014, %v1078
    %1080 = vmatmul.f32.gmra.mxu0 %v587
    %v1081 = vpop.f32.mrf.mxu0
    %v1082 = vadd.f32 %v1017, %v1081
    %1083 = vmatmul.f32.gmra.mxu0 %v603
    %v1084 = vpop.f32.mrf.mxu0
    %v1085 = vadd.f32 %v1020, %v1084
    %1086 = vmatmul.f32.gmra.mxu0 %v619
    %v1087 = vpop.f32.mrf.mxu0
    %v1088 = vadd.f32 %v1023, %v1087
    %1089 = vmatmul.f32.gmra.mxu0 %v635
    %v1090 = vpop.f32.mrf.mxu0
    %v1091 = vadd.f32 %v1026, %v1090
    %1092 = vmatmul.f32.gmra.mxu0 %v651
    %v1093 = vpop.f32.mrf.mxu0
    %v1094 = vadd.f32 %v1029, %v1093
    %1095 = vmatmul.f32.gmra.mxu0 %v667
    %v1096 = vpop.f32.mrf.mxu0
    %v1097 = vadd.f32 %v1032, %v1096
    %1098 = vmatmul.f32.gmra.mxu0 %v683
    %v1099 = vpop.f32.mrf.mxu0
    %v1100 = vadd.f32 %v1035, %v1099
    %1101 = vmatmul.f32.gmra.mxu0 %v699
    %v1102 = vpop.f32.mrf.mxu0
    %v1103 = vadd.f32 %v1038, %v1102
    %1104 = vmatmul.f32.gmra.mxu0 %v715
    %v1105 = vpop.f32.mrf.mxu0
    %v1106 = vadd.f32 %v1041, %v1105
    %1107 = vdwg.mxu0
    %1108 = vmatpush.msra.mxu0 %v280
    %1109 = vmatpush.msra.mxu0 %v279
    %1110 = vmatpush.msra.mxu0 %v278
    %1111 = vmatpush.msra.mxu0 %v277
    %1112 = vmatpush.msra.mxu0 %v276
    %1113 = vmatpush.msra.mxu0 %v275
    %1114 = vmatpush.msra.mxu0 %v274
    %1115 = vmatpush.msra.mxu0 %v273
    %1116 = vmatpush.msra.mxu0 %v272
    %1117 = vmatpush.msra.mxu0 %v271
    %1118 = vmatpush.msra.mxu0 %v270
    %1119 = vmatpush.msra.mxu0 %v269
    %1120 = vmatpush.msra.mxu0 %v268
    %1121 = vmatpush.msra.mxu0 %v267
    %1122 = vmatpush.msra.mxu0 %v266
    %1123 = vmatpush.msra.mxu0 %v265
    %1124 = vmatmul.f32.gmra.mxu0 %v476
    %v1125 = vpop.f32.mrf.mxu0
    %v1126 = vadd.f32 %v1061, %v1125
    %1127 = vmatmul.f32.gmra.mxu0 %v492
    %v1128 = vpop.f32.mrf.mxu0
    %v1129 = vadd.f32 %v1064, %v1128
    %1130 = vmatmul.f32.gmra.mxu0 %v508
    %v1131 = vpop.f32.mrf.mxu0
    %v1132 = vadd.f32 %v1067, %v1131
    %1133 = vmatmul.f32.gmra.mxu0 %v524
    %v1134 = vpop.f32.mrf.mxu0
    %v1135 = vadd.f32 %v1070, %v1134
    %1136 = vmatmul.f32.gmra.mxu0 %v540
    %v1137 = vpop.f32.mrf.mxu0
    %v1138 = vadd.f32 %v1073, %v1137
    %1139 = vmatmul.f32.gmra.mxu0 %v556
    %v1140 = vpop.f32.mrf.mxu0
    %v1141 = vadd.f32 %v1076, %v1140
    %1142 = vmatmul.f32.gmra.mxu0 %v572
    %v1143 = vpop.f32.mrf.mxu0
    %v1144 = vadd.f32 %v1079, %v1143
    %1145 = vmatmul.f32.gmra.mxu0 %v588
    %v1146 = vpop.f32.mrf.mxu0
    %v1147 = vadd.f32 %v1082, %v1146
    %1148 = vmatmul.f32.gmra.mxu0 %v604
    %v1149 = vpop.f32.mrf.mxu0
    %v1150 = vadd.f32 %v1085, %v1149
    %1151 = vmatmul.f32.gmra.mxu0 %v620
    %v1152 = vpop.f32.mrf.mxu0
    %v1153 = vadd.f32 %v1088, %v1152
    %1154 = vmatmul.f32.gmra.mxu0 %v636
    %v1155 = vpop.f32.mrf.mxu0
    %v1156 = vadd.f32 %v1091, %v1155
    %1157 = vmatmul.f32.gmra.mxu0 %v652
    %v1158 = vpop.f32.mrf.mxu0
    %v1159 = vadd.f32 %v1094, %v1158
    %1160 = vmatmul.f32.gmra.mxu0 %v668
    %v1161 = vpop.f32.mrf.mxu0
    %v1162 = vadd.f32 %v1097, %v1161
    %1163 = vmatmul.f32.gmra.mxu0 %v684
    %v1164 = vpop.f32.mrf.mxu0
    %v1165 = vadd.f32 %v1100, %v1164
    %1166 = vmatmul.f32.gmra.mxu0 %v700
    %v1167 = vpop.f32.mrf.mxu0
    %v1168 = vadd.f32 %v1103, %v1167
    %1169 = vmatmul.f32.gmra.mxu0 %v716
    %v1170 = vpop.f32.mrf.mxu0
    %v1171 = vadd.f32 %v1106, %v1170
    %1172 = vdwg.mxu0
    %1173 = vmatpush.msra.mxu0 %v296
    %1174 = vmatpush.msra.mxu0 %v295
    %1175 = vmatpush.msra.mxu0 %v294
    %1176 = vmatpush.msra.mxu0 %v293
    %1177 = vmatpush.msra.mxu0 %v292
    %1178 = vmatpush.msra.mxu0 %v291
    %1179 = vmatpush.msra.mxu0 %v290
    %1180 = vmatpush.msra.mxu0 %v289
    %1181 = vmatpush.msra.mxu0 %v288
    %1182 = vmatpush.msra.mxu0 %v287
    %1183 = vmatpush.msra.mxu0 %v286
    %1184 = vmatpush.msra.mxu0 %v285
    %1185 = vmatpush.msra.mxu0 %v284
    %1186 = vmatpush.msra.mxu0 %v283
    %1187 = vmatpush.msra.mxu0 %v282
    %1188 = vmatpush.msra.mxu0 %v281
    %1189 = vmatmul.f32.gmra.mxu0 %v477
    %v1190 = vpop.f32.mrf.mxu0
    %v1191 = vadd.f32 %v1126, %v1190
    %1192 = vmatmul.f32.gmra.mxu0 %v493
    %v1193 = vpop.f32.mrf.mxu0
    %v1194 = vadd.f32 %v1129, %v1193
    %1195 = vmatmul.f32.gmra.mxu0 %v509
    %v1196 = vpop.f32.mrf.mxu0
    %v1197 = vadd.f32 %v1132, %v1196
    %1198 = vmatmul.f32.gmra.mxu0 %v525
    %v1199 = vpop.f32.mrf.mxu0
    %v1200 = vadd.f32 %v1135, %v1199
    %1201 = vmatmul.f32.gmra.mxu0 %v541
    %v1202 = vpop.f32.mrf.mxu0
    %v1203 = vadd.f32 %v1138, %v1202
    %1204 = vmatmul.f32.gmra.mxu0 %v557
    %v1205 = vpop.f32.mrf.mxu0
    %v1206 = vadd.f32 %v1141, %v1205
    %1207 = vmatmul.f32.gmra.mxu0 %v573
    %v1208 = vpop.f32.mrf.mxu0
    %v1209 = vadd.f32 %v1144, %v1208
    %1210 = vmatmul.f32.gmra.mxu0 %v589
    %v1211 = vpop.f32.mrf.mxu0
    %v1212 = vadd.f32 %v1147, %v1211
    %1213 = vmatmul.f32.gmra.mxu0 %v605
    %v1214 = vpop.f32.mrf.mxu0
    %v1215 = vadd.f32 %v1150, %v1214
    %1216 = vmatmul.f32.gmra.mxu0 %v621
    %v1217 = vpop.f32.mrf.mxu0
    %v1218 = vadd.f32 %v1153, %v1217
    %1219 = vmatmul.f32.gmra.mxu0 %v637
    %v1220 = vpop.f32.mrf.mxu0
    %v1221 = vadd.f32 %v1156, %v1220
    %1222 = vmatmul.f32.gmra.mxu0 %v653
    %v1223 = vpop.f32.mrf.mxu0
    %v1224 = vadd.f32 %v1159, %v1223
    %1225 = vmatmul.f32.gmra.mxu0 %v669
    %v1226 = vpop.f32.mrf.mxu0
    %v1227 = vadd.f32 %v1162, %v1226
    %1228 = vmatmul.f32.gmra.mxu0 %v685
    %v1229 = vpop.f32.mrf.mxu0
    %v1230 = vadd.f32 %v1165, %v1229
    %1231 = vmatmul.f32.gmra.mxu0 %v701
    %v1232 = vpop.f32.mrf.mxu0
    %v1233 = vadd.f32 %v1168, %v1232
    %1234 = vmatmul.f32.gmra.mxu0 %v717
    %v1235 = vpop.f32.mrf.mxu0
    %v1236 = vadd.f32 %v1171, %v1235
    %1237 = vdwg.mxu0
    %1238 = vmatpush.msra.mxu0 %v312
    %1239 = vmatpush.msra.mxu0 %v311
    %1240 = vmatpush.msra.mxu0 %v310
    %1241 = vmatpush.msra.mxu0 %v309
    %1242 = vmatpush.msra.mxu0 %v308
    %1243 = vmatpush.msra.mxu0 %v307
    %1244 = vmatpush.msra.mxu0 %v306
    %1245 = vmatpush.msra.mxu0 %v305
    %1246 = vmatpush.msra.mxu0 %v304
    %1247 = vmatpush.msra.mxu0 %v303
    %1248 = vmatpush.msra.mxu0 %v302
    %1249 = vmatpush.msra.mxu0 %v301
    %1250 = vmatpush.msra.mxu0 %v300
    %1251 = vmatpush.msra.mxu0 %v299
    %1252 = vmatpush.msra.mxu0 %v298
    %1253 = vmatpush.msra.mxu0 %v297
    %1254 = vmatmul.f32.gmra.mxu0 %v478
    %v1255 = vpop.f32.mrf.mxu0
    %v1256 = vadd.f32 %v1191, %v1255
    %1257 = vmatmul.f32.gmra.mxu0 %v494
    %v1258 = vpop.f32.mrf.mxu0
    %v1259 = vadd.f32 %v1194, %v1258
    %1260 = vmatmul.f32.gmra.mxu0 %v510
    %v1261 = vpop.f32.mrf.mxu0
    %v1262 = vadd.f32 %v1197, %v1261
    %1263 = vmatmul.f32.gmra.mxu0 %v526
    %v1264 = vpop.f32.mrf.mxu0
    %v1265 = vadd.f32 %v1200, %v1264
    %1266 = vmatmul.f32.gmra.mxu0 %v542
    %v1267 = vpop.f32.mrf.mxu0
    %v1268 = vadd.f32 %v1203, %v1267
    %1269 = vmatmul.f32.gmra.mxu0 %v558
    %v1270 = vpop.f32.mrf.mxu0
    %v1271 = vadd.f32 %v1206, %v1270
    %1272 = vmatmul.f32.gmra.mxu0 %v574
    %v1273 = vpop.f32.mrf.mxu0
    %v1274 = vadd.f32 %v1209, %v1273
    %1275 = vmatmul.f32.gmra.mxu0 %v590
    %v1276 = vpop.f32.mrf.mxu0
    %v1277 = vadd.f32 %v1212, %v1276
    %1278 = vmatmul.f32.gmra.mxu0 %v606
    %v1279 = vpop.f32.mrf.mxu0
    %v1280 = vadd.f32 %v1215, %v1279
    %1281 = vmatmul.f32.gmra.mxu0 %v622
    %v1282 = vpop.f32.mrf.mxu0
    %v1283 = vadd.f32 %v1218, %v1282
    %1284 = vmatmul.f32.gmra.mxu0 %v638
    %v1285 = vpop.f32.mrf.mxu0
    %v1286 = vadd.f32 %v1221, %v1285
    %1287 = vmatmul.f32.gmra.mxu0 %v654
    %v1288 = vpop.f32.mrf.mxu0
    %v1289 = vadd.f32 %v1224, %v1288
    %1290 = vmatmul.f32.gmra.mxu0 %v670
    %v1291 = vpop.f32.mrf.mxu0
    %v1292 = vadd.f32 %v1227, %v1291
    %1293 = vmatmul.f32.gmra.mxu0 %v686
    %v1294 = vpop.f32.mrf.mxu0
    %v1295 = vadd.f32 %v1230, %v1294
    %1296 = vmatmul.f32.gmra.mxu0 %v702
    %v1297 = vpop.f32.mrf.mxu0
    %v1298 = vadd.f32 %v1233, %v1297
    %1299 = vmatmul.f32.gmra.mxu0 %v718
    %v1300 = vpop.f32.mrf.mxu0
    %v1301 = vadd.f32 %v1236, %v1300
    %1302 = vdwg.mxu0
    %1303 = vmatpush.msra.mxu0 %v328
    %1304 = vmatpush.msra.mxu0 %v327
    %1305 = vmatpush.msra.mxu0 %v326
    %1306 = vmatpush.msra.mxu0 %v325
    %1307 = vmatpush.msra.mxu0 %v324
    %1308 = vmatpush.msra.mxu0 %v323
    %1309 = vmatpush.msra.mxu0 %v322
    %1310 = vmatpush.msra.mxu0 %v321
    %1311 = vmatpush.msra.mxu0 %v320
    %1312 = vmatpush.msra.mxu0 %v319
    %1313 = vmatpush.msra.mxu0 %v318
    %1314 = vmatpush.msra.mxu0 %v317
    %1315 = vmatpush.msra.mxu0 %v316
    %1316 = vmatpush.msra.mxu0 %v315
    %1317 = vmatpush.msra.mxu0 %v314
    %1318 = vmatpush.msra.mxu0 %v313
    %1319 = vmatmul.f32.gmra.mxu0 %v479
    %v1320 = vpop.f32.mrf.mxu0
    %v1321 = vadd.f32 %v1256, %v1320
    %1322 = vmatmul.f32.gmra.mxu0 %v495
    %v1323 = vpop.f32.mrf.mxu0
    %v1324 = vadd.f32 %v1259, %v1323
    %1325 = vmatmul.f32.gmra.mxu0 %v511
    %v1326 = vpop.f32.mrf.mxu0
    %v1327 = vadd.f32 %v1262, %v1326
    %1328 = vmatmul.f32.gmra.mxu0 %v527
    %v1329 = vpop.f32.mrf.mxu0
    %v1330 = vadd.f32 %v1265, %v1329
    %1331 = vmatmul.f32.gmra.mxu0 %v543
    %v1332 = vpop.f32.mrf.mxu0
    %v1333 = vadd.f32 %v1268, %v1332
    %1334 = vmatmul.f32.gmra.mxu0 %v559
    %v1335 = vpop.f32.mrf.mxu0
    %v1336 = vadd.f32 %v1271, %v1335
    %1337 = vmatmul.f32.gmra.mxu0 %v575
    %v1338 = vpop.f32.mrf.mxu0
    %v1339 = vadd.f32 %v1274, %v1338
    %1340 = vmatmul.f32.gmra.mxu0 %v591
    %v1341 = vpop.f32.mrf.mxu0
    %v1342 = vadd.f32 %v1277, %v1341
    %1343 = vmatmul.f32.gmra.mxu0 %v607
    %v1344 = vpop.f32.mrf.mxu0
    %v1345 = vadd.f32 %v1280, %v1344
    %1346 = vmatmul.f32.gmra.mxu0 %v623
    %v1347 = vpop.f32.mrf.mxu0
    %v1348 = vadd.f32 %v1283, %v1347
    %1349 = vmatmul.f32.gmra.mxu0 %v639
    %v1350 = vpop.f32.mrf.mxu0
    %v1351 = vadd.f32 %v1286, %v1350
    %1352 = vmatmul.f32.gmra.mxu0 %v655
    %v1353 = vpop.f32.mrf.mxu0
    %v1354 = vadd.f32 %v1289, %v1353
    %1355 = vmatmul.f32.gmra.mxu0 %v671
    %v1356 = vpop.f32.mrf.mxu0
    %v1357 = vadd.f32 %v1292, %v1356
    %1358 = vmatmul.f32.gmra.mxu0 %v687
    %v1359 = vpop.f32.mrf.mxu0
    %v1360 = vadd.f32 %v1295, %v1359
    %1361 = vmatmul.f32.gmra.mxu0 %v703
    %v1362 = vpop.f32.mrf.mxu0
    %v1363 = vadd.f32 %v1298, %v1362
    %1364 = vmatmul.f32.gmra.mxu0 %v719
    %v1365 = vpop.f32.mrf.mxu0
    %v1366 = vadd.f32 %v1301, %v1365
    %1367 = vdwg.mxu0
    %v1368 = vadd.f32 %v57, %v1321
    %v1369 = vadd.f32 %v58, %v1324
    %v1370 = vadd.f32 %v59, %v1327
    %v1371 = vadd.f32 %v60, %v1330
    %v1372 = vadd.f32 %v61, %v1333
    %v1373 = vadd.f32 %v62, %v1336
    %v1374 = vadd.f32 %v63, %v1339
    %v1375 = vadd.f32 %v64, %v1342
    %v1376 = vadd.f32 %v65, %v1345
    %v1377 = vadd.f32 %v66, %v1348
    %v1378 = vadd.f32 %v67, %v1351
    %v1379 = vadd.f32 %v68, %v1354
    %v1380 = vadd.f32 %v69, %v1357
    %v1381 = vadd.f32 %v70, %v1360
    %v1382 = vadd.f32 %v71, %v1363
    %v1383 = vadd.f32 %v72, %v1366
    %1384 = vst [vmem:[#allocation2] sm:$0xff] %v1368
    %1385 = vst [vmem:[#allocation2 + $0x8] sm:$0xff] %v1369
    %1386 = vst [vmem:[#allocation2 + $0x10] sm:$0xff] %v1370
    %1387 = vst [vmem:[#allocation2 + $0x18] sm:$0xff] %v1371
    %1388 = vst [vmem:[#allocation2 + $0x20] sm:$0xff] %v1372
    %1389 = vst [vmem:[#allocation2 + $0x28] sm:$0xff] %v1373
    %1390 = vst [vmem:[#allocation2 + $0x30] sm:$0xff] %v1374
    %1391 = vst [vmem:[#allocation2 + $0x38] sm:$0xff] %v1375
    %1392 = vst [vmem:[#allocation2 + $0x40] sm:$0xff] %v1376
    %1393 = vst [vmem:[#allocation2 + $0x48] sm:$0xff] %v1377
    %1394 = vst [vmem:[#allocation2 + $0x50] sm:$0xff] %v1378
    %1395 = vst [vmem:[#allocation2 + $0x58] sm:$0xff] %v1379
    %1396 = vst [vmem:[#allocation2 + $0x60] sm:$0xff] %v1380
    %1397 = vst [vmem:[#allocation2 + $0x68] sm:$0xff] %v1381
    %1398 = vst [vmem:[#allocation2 + $0x70] sm:$0xff] %v1382
    %1399 = vst [vmem:[#allocation2 + $0x78] sm:$0xff] %v1383
    // Predicated region
    $region30: #{two_mlp_head.1} parent=1 // pred_check
      %p1400 = pneg %p37
    $region31: #{two_mlp_head.1} parent=1 // pred_check_branch
      %1402 = sbr.rel (%p1400) target = $region33
    $region32: #{two_mlp_head.1} parent=1 // pred_region
      %v1403 = vld [vmem:[#allocation2] sm:$0xff]
      %v1404 = vld [vmem:[#allocation2 + $0x8] sm:$0xff]
      %v1405 = vld [vmem:[#allocation2 + $0x10] sm:$0xff]
      %v1406 = vld [vmem:[#allocation2 + $0x18] sm:$0xff]
      %v1407 = vld [vmem:[#allocation2 + $0x20] sm:$0xff]
      %v1408 = vld [vmem:[#allocation2 + $0x28] sm:$0xff]
      %v1409 = vld [vmem:[#allocation2 + $0x30] sm:$0xff]
      %v1410 = vld [vmem:[#allocation2 + $0x38] sm:$0xff]
      %v1411 = vld [vmem:[#allocation2 + $0x40] sm:$0xff]
      %v1412 = vld [vmem:[#allocation2 + $0x48] sm:$0xff]
      %v1413 = vld [vmem:[#allocation2 + $0x50] sm:$0xff]
      %v1414 = vld [vmem:[#allocation2 + $0x58] sm:$0xff]
      %v1415 = vld [vmem:[#allocation2 + $0x60] sm:$0xff]
      %v1416 = vld [vmem:[#allocation2 + $0x68] sm:$0xff]
      %v1417 = vld [vmem:[#allocation2 + $0x70] sm:$0xff]
      %v1418 = vld [vmem:[#allocation2 + $0x78] sm:$0xff]
      %v1419 = vld [vmem:[%s2] sm:$0x1]
      %v1421 = vperm.slane %v1419, 0
      %v1423 = vadd.f32 %v1403, %v1421
      %v1424 = vadd.f32 %v1404, %v1421
      %v1425 = vadd.f32 %v1405, %v1421
      %v1426 = vadd.f32 %v1406, %v1421
      %v1427 = vadd.f32 %v1407, %v1421
      %v1428 = vadd.f32 %v1408, %v1421
      %v1429 = vadd.f32 %v1409, %v1421
      %v1430 = vadd.f32 %v1410, %v1421
      %v1431 = vadd.f32 %v1411, %v1421
      %v1432 = vadd.f32 %v1412, %v1421
      %v1433 = vadd.f32 %v1413, %v1421
      %v1434 = vadd.f32 %v1414, %v1421
      %v1435 = vadd.f32 %v1415, %v1421
      %v1436 = vadd.f32 %v1416, %v1421
      %v1437 = vadd.f32 %v1417, %v1421
      %v1438 = vadd.f32 %v1418, %v1421
      %v1439 = vmax.f32 %v1423, 0.0
      %v1440 = vmax.f32 %v1424, 0.0
      %v1441 = vmax.f32 %v1425, 0.0
      %v1442 = vmax.f32 %v1426, 0.0
      %v1443 = vmax.f32 %v1427, 0.0
      %v1444 = vmax.f32 %v1428, 0.0
      %v1445 = vmax.f32 %v1429, 0.0
      %v1446 = vmax.f32 %v1430, 0.0
      %v1447 = vmax.f32 %v1431, 0.0
      %v1448 = vmax.f32 %v1432, 0.0
      %v1449 = vmax.f32 %v1433, 0.0
      %v1450 = vmax.f32 %v1434, 0.0
      %v1451 = vmax.f32 %v1435, 0.0
      %v1452 = vmax.f32 %v1436, 0.0
      %v1453 = vmax.f32 %v1437, 0.0
      %v1454 = vmax.f32 %v1438, 0.0
      %v1455 = vld [vmem:[%s3] sm:$0xff]
      %v1456 = vld [vmem:[%s3 + $0x8] sm:$0xff]
      %v1457 = vld [vmem:[%s3 + $0x10] sm:$0xff]
      %v1458 = vld [vmem:[%s3 + $0x18] sm:$0xff]
      %v1459 = vld [vmem:[%s3 + $0x20] sm:$0xff]
      %v1460 = vld [vmem:[%s3 + $0x28] sm:$0xff]
      %v1461 = vld [vmem:[%s3 + $0x30] sm:$0xff]
      %v1462 = vld [vmem:[%s3 + $0x38] sm:$0xff]
      %v1463 = vld [vmem:[%s3 + $0x40] sm:$0xff]
      %v1464 = vld [vmem:[%s3 + $0x48] sm:$0xff]
      %v1465 = vld [vmem:[%s3 + $0x50] sm:$0xff]
      %v1466 = vld [vmem:[%s3 + $0x58] sm:$0xff]
      %v1467 = vld [vmem:[%s3 + $0x60] sm:$0xff]
      %v1468 = vld [vmem:[%s3 + $0x68] sm:$0xff]
      %v1469 = vld [vmem:[%s3 + $0x70] sm:$0xff]
      %v1470 = vld [vmem:[%s3 + $0x78] sm:$0xff]
      %v1471 = vld [vmem:[%s4] sm:$0x1]
      %v1473 = vperm.slane %v1471, 0
      %1475 = vmatpush.msra.mxu0 %v1470
      %1476 = vmatpush.msra.mxu0 %v1469
      %1477 = vmatpush.msra.mxu0 %v1468
      %1478 = vmatpush.msra.mxu0 %v1467
      %1479 = vmatpush.msra.mxu0 %v1466
      %1480 = vmatpush.msra.mxu0 %v1465
      %1481 = vmatpush.msra.mxu0 %v1464
      %1482 = vmatpush.msra.mxu0 %v1463
      %1483 = vmatpush.msra.mxu0 %v1462
      %1484 = vmatpush.msra.mxu0 %v1461
      %1485 = vmatpush.msra.mxu0 %v1460
      %1486 = vmatpush.msra.mxu0 %v1459
      %1487 = vmatpush.msra.mxu0 %v1458
      %1488 = vmatpush.msra.mxu0 %v1457
      %1489 = vmatpush.msra.mxu0 %v1456
      %1490 = vmatpush.msra.mxu0 %v1455
      %1491 = vmatmul.f32.gmra.mxu0 %v1439
      %v1492 = vpop.f32.mrf.mxu0
      %v1493 = vadd.f32 %v1473, %v1492
      %1494 = vmatmul.f32.gmra.mxu0 %v1440
      %v1495 = vpop.f32.mrf.mxu0
      %v1496 = vadd.f32 %v1473, %v1495
      %1497 = vmatmul.f32.gmra.mxu0 %v1441
      %v1498 = vpop.f32.mrf.mxu0
      %v1499 = vadd.f32 %v1473, %v1498
      %1500 = vmatmul.f32.gmra.mxu0 %v1442
      %v1501 = vpop.f32.mrf.mxu0
      %v1502 = vadd.f32 %v1473, %v1501
      %1503 = vmatmul.f32.gmra.mxu0 %v1443
      %v1504 = vpop.f32.mrf.mxu0
      %v1505 = vadd.f32 %v1473, %v1504
      %1506 = vmatmul.f32.gmra.mxu0 %v1444
      %v1507 = vpop.f32.mrf.mxu0
      %v1508 = vadd.f32 %v1473, %v1507
      %1509 = vmatmul.f32.gmra.mxu0 %v1445
      %v1510 = vpop.f32.mrf.mxu0
      %v1511 = vadd.f32 %v1473, %v1510
      %1512 = vmatmul.f32.gmra.mxu0 %v1446
      %v1513 = vpop.f32.mrf.mxu0
      %v1514 = vadd.f32 %v1473, %v1513
      %1515 = vmatmul.f32.gmra.mxu0 %v1447
      %v1516 = vpop.f32.mrf.mxu0
      %v1517 = vadd.f32 %v1473, %v1516
      %1518 = vmatmul.f32.gmra.mxu0 %v1448
      %v1519 = vpop.f32.mrf.mxu0
      %v1520 = vadd.f32 %v1473, %v1519
      %1521 = vmatmul.f32.gmra.mxu0 %v1449
      %v1522 = vpop.f32.mrf.mxu0
      %v1523 = vadd.f32 %v1473, %v1522
      %1524 = vmatmul.f32.gmra.mxu0 %v1450
      %v1525 = vpop.f32.mrf.mxu0
      %v1526 = vadd.f32 %v1473, %v1525
      %1527 = vmatmul.f32.gmra.mxu0 %v1451
      %v1528 = vpop.f32.mrf.mxu0
      %v1529 = vadd.f32 %v1473, %v1528
      %1530 = vmatmul.f32.gmra.mxu0 %v1452
      %v1531 = vpop.f32.mrf.mxu0
      %v1532 = vadd.f32 %v1473, %v1531
      %1533 = vmatmul.f32.gmra.mxu0 %v1453
      %v1534 = vpop.f32.mrf.mxu0
      %v1535 = vadd.f32 %v1473, %v1534
      %1536 = vmatmul.f32.gmra.mxu0 %v1454
      %v1537 = vpop.f32.mrf.mxu0
      %v1538 = vadd.f32 %v1473, %v1537
      %1539 = vdwg.mxu0
      %v1540 = vmax.f32 %v1493, 0.0
      %v1541 = vmax.f32 %v1496, 0.0
      %v1542 = vmax.f32 %v1499, 0.0
      %v1543 = vmax.f32 %v1502, 0.0
      %v1544 = vmax.f32 %v1505, 0.0
      %v1545 = vmax.f32 %v1508, 0.0
      %v1546 = vmax.f32 %v1511, 0.0
      %v1547 = vmax.f32 %v1514, 0.0
      %v1548 = vmax.f32 %v1517, 0.0
      %v1549 = vmax.f32 %v1520, 0.0
      %v1550 = vmax.f32 %v1523, 0.0
      %v1551 = vmax.f32 %v1526, 0.0
      %v1552 = vmax.f32 %v1529, 0.0
      %v1553 = vmax.f32 %v1532, 0.0
      %v1554 = vmax.f32 %v1535, 0.0
      %v1555 = vmax.f32 %v1538, 0.0
      %1556 = vst [vmem:[#allocation6] sm:$0xff] %v1540
      %1557 = vst [vmem:[#allocation6 + $0x8] sm:$0xff] %v1541
      %1558 = vst [vmem:[#allocation6 + $0x10] sm:$0xff] %v1542
      %1559 = vst [vmem:[#allocation6 + $0x18] sm:$0xff] %v1543
      %1560 = vst [vmem:[#allocation6 + $0x20] sm:$0xff] %v1544
      %1561 = vst [vmem:[#allocation6 + $0x28] sm:$0xff] %v1545
      %1562 = vst [vmem:[#allocation6 + $0x30] sm:$0xff] %v1546
      %1563 = vst [vmem:[#allocation6 + $0x38] sm:$0xff] %v1547
      %1564 = vst [vmem:[#allocation6 + $0x40] sm:$0xff] %v1548
      %1565 = vst [vmem:[#allocation6 + $0x48] sm:$0xff] %v1549
      %1566 = vst [vmem:[#allocation6 + $0x50] sm:$0xff] %v1550
      %1567 = vst [vmem:[#allocation6 + $0x58] sm:$0xff] %v1551
      %1568 = vst [vmem:[#allocation6 + $0x60] sm:$0xff] %v1552
      %1569 = vst [vmem:[#allocation6 + $0x68] sm:$0xff] %v1553
      %1570 = vst [vmem:[#allocation6 + $0x70] sm:$0xff] %v1554
      %1571 = vst [vmem:[#allocation6 + $0x78] sm:$0xff] %v1555
    $region33: #{two_mlp_head.1} parent=1 // pred_fallthru
      _
    // Predicated region
    $region34: #{two_mlp_head.1} parent=1 // pred_check
      _
    $region35: #{two_mlp_head.1} parent=1 // pred_check_branch
      %1573 = sbr.rel (0) target = $region37
    $region36: #{two_mlp_head.1} parent=1 // pred_region
      %1575 = vsyncadd [#allocation5], 2016
      %s1576 = sshll.u32 [#allocation6], 4
      %s1577 = int_to_ptr.vmem [resolvable:$true] %s1576
      %s1578 = sshll.u32 %s5, 4
      %s1579 = int_to_ptr.hbm [resolvable:$true] %s1578
      %1584 = dma.vmem_to_hbm [thread:$0]  %s1577, 32, %s1579, [#allocation5], 32, 32, 2
    $region37: #{two_mlp_head.1} parent=1 // pred_fallthru
      _
    // Predicated region
    $region38: #{two_mlp_head.1} parent=1 // pred_check
      _
    $region39: #{two_mlp_head.1} parent=1 // pred_check_branch
      %1586 = sbr.rel (0) target = $region41
    $region40: #{two_mlp_head.1} parent=1 // pred_region
      %1588 = dma.done [#allocation5], 2048
    $region41: #{two_mlp_head.1} parent=1 // pred_fallthru
      _
    %1589 = vsyncpa [#allocation4], 1
    %1590 = vsyncpa [#allocation5], 1

</llo_original>
